<compile_context>
chip_gen: v6e
topology: v6e:2x2x1
jax: 0.10.0
libtpu: 0.0.40
codegen_flags: <defaults>
</compile_context>

<pallas_src>
import functools

import numpy as np

import jax
import jax.numpy as jnp
from jax.experimental import pallas as pl
from jax.experimental.pallas import tpu as pltpu


def _mem_pool_kernel(x_ref, mask_ref, k_ref, ksq_ref, e_ref, etw_ref,
                     msum_ref, lw_ref, xp_ref, s_ref, *,
                     bt, n, heads, num_clusters, tau):
    H, K = heads, num_clusters
    bn = bt * n

    x3 = x_ref[...]                                   # (Bt, N, F)
    xf = x3.reshape(bn, x3.shape[-1])                 # (Bt*N, F)  layout-free (N % 8 == 0)
    mf = mask_ref[...].reshape(bn, 1)                 # (Bt*N, 1)
    kf = k_ref[...]                                   # (F, H*K)

    # squared euclidean distance ||x||^2 + ||k||^2 - 2 x.k  (all in f32)
    x_sq = jnp.sum(xf * xf, axis=-1, keepdims=True)                 # (Bt*N, 1)
    xk = jnp.dot(xf, kf, preferred_element_type=jnp.float32)        # (Bt*N, H*K)
    d2 = jnp.maximum(x_sq + ksq_ref[...] - 2.0 * xk, 0.0)

    # student-t kernel (1 + d2/tau)^(-(tau+1)/2); exponent == -1 when tau == 1
    expo = -(tau + 1.0) / 2.0
    if expo == -1.0:
        d = 1.0 / (1.0 + d2 / tau)                                  # (Bt*N, H*K)
    else:
        d = jnp.exp(expo * jnp.log(1.0 + d2 / tau))

    # per-head normalisation over clusters + 1x1 conv head mixing, as matmuls:
    #   denom[n,h]        = sum_j d[n, h*K+j]
    #   scale[n, h*K+j]   = conv_w[h] / denom[n,h]
    #   S[n,k]            = sum_h conv_w[h] * d[n, h*K+k] / denom[n,h]
    denom = jnp.dot(d, e_ref[...], preferred_element_type=jnp.float32)      # (Bt*N, H)
    scale = jnp.dot(1.0 / denom, etw_ref[...],
                    preferred_element_type=jnp.float32)                     # (Bt*N, H*K)
    S = jnp.dot(d * scale, msum_ref[...],
                preferred_element_type=jnp.float32)                         # (Bt*N, K)

    # softmax over clusters, then apply node mask (PyTorch order)
    S = S - jnp.max(S, axis=-1, keepdims=True)
    S = jnp.exp(S)
    S = S / jnp.sum(S, axis=-1, keepdims=True)
    S = S * mf

    S3 = S.reshape(bt, n, K)
    s_ref[...] = S3

    # x' = (S^T X) W^T, batched over the graphs in this block
    pooled = jnp.einsum('bnk,bnf->bkf', S3, x3,
                        preferred_element_type=jnp.float32)         # (Bt, K, F)
    xp = jnp.dot(pooled.reshape(bt * K, pooled.shape[-1]), lw_ref[...],
                 preferred_element_type=jnp.float32)                # (Bt*K, Fp)
    xp_ref[...] = xp.reshape(bt, K, xp.shape[-1])


def _choose_block_b(B, N, F, H, K, Fp, budget_bytes=8 * 1024 * 1024):
    """Largest divisor of B within a conservative VMEM budget, preferring
    at least 2 grid steps so the batch axis can shard across TensorCores."""
    per_graph = 4 * N * (F + 1 + K + 4 * H * K) * 2 + 4 * K * Fp * 2
    cap = max(1, budget_bytes // max(per_graph, 1))
    divisors = [d for d in range(1, B + 1) if B % d == 0 and d <= cap]
    if not divisors:
        return 1
    multi_step = [d for d in divisors if B // d >= 2]
    return max(multi_step) if multi_step else max(divisors)


def mem_pooling(x_dense, mask, k, conv_w, lin_w, *, tau=1.0, block_b=None):
    """x_dense: (B, N, F); mask: (B, N) bool; k: (H, K, F);
    conv_w: (H,) [squeezed 1x1 Conv2d weight]; lin_w: (Fp, F)."""
    B, N, F = x_dense.shape
    H, K, _ = k.shape
    Fp = lin_w.shape[0]

    # Pad the node axis to a multiple of 8 so in-kernel reshapes between
    # (Bt*N, .) and (Bt, N, .) are sublane-tiling preserving.
    Np = -(-N // 8) * 8
    if Np != N:
        x_dense = jnp.pad(x_dense, ((0, 0), (0, Np - N), (0, 0)))
        mask = jnp.pad(mask, ((0, 0), (0, Np - N)))

    if block_b is None:
        block_b = _choose_block_b(B, Np, F, H, K, Fp)
    if B % block_b != 0:
        raise ValueError("block_b must divide the batch size")

    # grid-invariant constants, hoisted out of the kernel
    k_fhk = jnp.transpose(k.reshape(H * K, F))                       # (F, H*K)
    k_sq = jnp.sum(k_fhk * k_fhk, axis=0, keepdims=True)             # (1, H*K)
    lin_wT = jnp.transpose(lin_w)                                    # (F, Fp)
    e_mat = jnp.repeat(jnp.eye(H, dtype=jnp.float32), K, axis=0)     # (H*K, H)
    etw_mat = conv_w.astype(jnp.float32)[:, None] * e_mat.T          # (H, H*K)
    msum_mat = jnp.tile(jnp.eye(K, dtype=jnp.float32), (H, 1))       # (H*K, K)
    mask_f = mask.astype(jnp.float32)[..., None]                     # (B, Np, 1)

    kernel = functools.partial(_mem_pool_kernel, bt=block_b, n=Np,
                               heads=H, num_clusters=K, tau=float(tau))

    xp, S = pl.pallas_call(
        kernel,
        out_shape=(
            jax.ShapeDtypeStruct((B, K, Fp), jnp.float32),
            jax.ShapeDtypeStruct((B, Np, K), jnp.float32),
        ),
        grid=(B // block_b,),
        in_specs=[
            pl.BlockSpec((block_b, Np, F), lambda b: (b, 0, 0)),     # x
            pl.BlockSpec((block_b, Np, 1), lambda b: (b, 0, 0)),     # node mask
            pl.BlockSpec((F, H * K), lambda b: (0, 0)),              # cluster keys
            pl.BlockSpec((1, H * K), lambda b: (0, 0)),              # ||k||^2
            pl.BlockSpec((H * K, H), lambda b: (0, 0)),              # head-sum one-hot
            pl.BlockSpec((H, H * K), lambda b: (0, 0)),              # conv-scaled expand
            pl.BlockSpec((H * K, K), lambda b: (0, 0)),              # head-mix sum
            pl.BlockSpec((F, Fp), lambda b: (0, 0)),                 # linear weight^T
        ],
        out_specs=(
            pl.BlockSpec((block_b, K, Fp), lambda b: (b, 0, 0)),
            pl.BlockSpec((block_b, Np, K), lambda b: (b, 0, 0)),
        ),
        compiler_params=pltpu.CompilerParams(
            dimension_semantics=("parallel",)),
    )(x_dense, mask_f, k_fhk, k_sq, e_mat, etw_mat, msum_mat, lin_wT)

    if Np != N:
        S = S[:, :N, :]
    return xp, S


def to_dense_batch(x, batch, batch_size, max_num_nodes):
    """Minimal to_dense_batch (assumes `batch` sorted, as torch_geometric does)."""
    num = x.shape[0]
    counts = jax.ops.segment_sum(jnp.ones(num, jnp.int32), batch,
                                 num_segments=batch_size)
    ptr = jnp.concatenate([jnp.zeros(1, jnp.int32),
                           jnp.cumsum(counts)[:-1]])
    pos = jnp.arange(num) - ptr[batch]
    dense = jnp.zeros((batch_size, max_num_nodes, x.shape[1]),
                      x.dtype).at[batch, pos].set(x)
    mask = jnp.zeros((batch_size, max_num_nodes), bool).at[batch, pos].set(True)
    return dense, mask


def mem_pooling_ref(x_dense, mask, k, conv_w, lin_w, tau):
    """Plain-JAX reference mirroring the PyTorch forward."""
    d2 = jnp.sum((x_dense[:, None, :, None, :] -
                  k[None, :, None, :, :]) ** 2, axis=-1)      # (B, H, N, K)
    d = (1.0 + d2 / tau) ** (-(tau + 1.0) / 2.0)
    S = d / jnp.sum(d, axis=-1, keepdims=True)
    S = jnp.einsum('bhnk,h->bnk', S, conv_w)                  # 1x1 conv
    S = jax.nn.softmax(S, axis=-1)
    S = S * mask[..., None].astype(S.dtype)
    xp = jnp.einsum('bnk,bnf,pf->bkp', S, x_dense, lin_w)
    return xp, S


if __name__ == "__main__":
    B = 8          # batch (number of graphs)
    F = 32         # in_channels
    Fp = 16        # out_channels
    H = 4          # heads
    K = 8          # num_clusters
    tau = 1.0
    counts = [10, 14, 7, 12, 9, 13, 11, 8]
    max_N = max(counts)

    key = jax.random.PRNGKey(0)
    k_key, c_key, l_key, x_key = jax.random.split(key, 4)

    # parameters (deterministic, matching shapes of the torch module)
    k_param = jax.random.uniform(k_key, (H, K, F), jnp.float32, -1.0, 1.0)
    conv_w = jax.random.uniform(c_key, (H,), jnp.float32, -1.0, 1.0) / jnp.sqrt(H)
    lin_w = jax.random.uniform(l_key, (Fp, F), jnp.float32, -1.0, 1.0) / jnp.sqrt(F)

    # node features + batch assignment vector, densified
    num_nodes = sum(counts)
    x_nodes = jax.random.normal(x_key, (num_nodes, F), jnp.float32)
    batch = jnp.asarray(np.repeat(np.arange(B), counts), jnp.int32)
    x_dense, mask = to_dense_batch(x_nodes, batch, B, max_N)

    xp, S = mem_pooling(x_dense, mask, k_param, conv_w, lin_w, tau=tau)
    jax.block_until_ready((xp, S))

    xp_ref, S_ref = mem_pooling_ref(x_dense, mask, k_param, conv_w, lin_w, tau)
    assert jnp.allclose(S, S_ref, atol=1e-4, rtol=1e-4), "S mismatch"
    assert jnp.allclose(xp, xp_ref, atol=1e-3, rtol=1e-3), "x' mismatch"

    print("KERNEL_OK")
</pallas_src>

<mosaic_0001>
module attributes {stable_mosaic.version = 11 : i64} {
  func.func @_mem_pool_kernel(%arg0: i32, %arg1: memref<4x16x32xf32, #tpu.memory_space<vmem>>, %arg2: memref<4x16x1xf32, #tpu.memory_space<vmem>>, %arg3: memref<32x32xf32, #tpu.memory_space<vmem>>, %arg4: memref<1x32xf32, #tpu.memory_space<vmem>>, %arg5: memref<32x4xf32, #tpu.memory_space<vmem>>, %arg6: memref<4x32xf32, #tpu.memory_space<vmem>>, %arg7: memref<32x8xf32, #tpu.memory_space<vmem>>, %arg8: memref<32x16xf32, #tpu.memory_space<vmem>>, %arg9: memref<4x8x16xf32, #tpu.memory_space<vmem>>, %arg10: memref<4x16x8xf32, #tpu.memory_space<vmem>>) attributes {dimension_semantics = [#tpu.dimension_semantics<parallel>], iteration_bounds = array<i64: 2>, scalar_prefetch = 0 : i64, scratch_operands = 0 : i64, tpu.core_type = #tpu.core_type<tc>, window_params = [{transform_indices = @transform_0, window_bounds = array<i64: 4, 16, 32>}, {transform_indices = @transform_1, window_bounds = array<i64: 4, 16, 1>}, {pipeline_mode = #tpu.pipeline_mode<synchronous>, transform_indices = @transform_2, window_bounds = array<i64: 32, 32>}, {pipeline_mode = #tpu.pipeline_mode<synchronous>, transform_indices = @transform_3, window_bounds = array<i64: 1, 32>}, {pipeline_mode = #tpu.pipeline_mode<synchronous>, transform_indices = @transform_4, window_bounds = array<i64: 32, 4>}, {pipeline_mode = #tpu.pipeline_mode<synchronous>, transform_indices = @transform_5, window_bounds = array<i64: 4, 32>}, {pipeline_mode = #tpu.pipeline_mode<synchronous>, transform_indices = @transform_6, window_bounds = array<i64: 32, 8>}, {pipeline_mode = #tpu.pipeline_mode<synchronous>, transform_indices = @transform_7, window_bounds = array<i64: 32, 16>}, {transform_indices = @transform_8, window_bounds = array<i64: 4, 8, 16>}, {transform_indices = @transform_9, window_bounds = array<i64: 4, 16, 8>}]} {
    %c0 = arith.constant 0 : index
    %c0_0 = arith.constant 0 : index
    %c0_1 = arith.constant 0 : index
    %0 = vector.load %arg1[%c0, %c0_0, %c0_1] : memref<4x16x32xf32, #tpu.memory_space<vmem>>, vector<4x16x32xf32>
    %1 = vector.shape_cast %0 : vector<4x16x32xf32> to vector<64x32xf32>
    %c0_2 = arith.constant 0 : index
    %c0_3 = arith.constant 0 : index
    %c0_4 = arith.constant 0 : index
    %2 = vector.load %arg2[%c0_2, %c0_3, %c0_4] : memref<4x16x1xf32, #tpu.memory_space<vmem>>, vector<4x16x1xf32>
    %3 = vector.shape_cast %2 : vector<4x16x1xf32> to vector<64x1xf32>
    %c0_5 = arith.constant 0 : index
    %c0_6 = arith.constant 0 : index
    %4 = vector.load %arg3[%c0_5, %c0_6] : memref<32x32xf32, #tpu.memory_space<vmem>>, vector<32x32xf32>
    %5 = arith.mulf %1, %1 : vector<64x32xf32>
    %cst = arith.constant dense<0.000000e+00> : vector<64xf32>
    %6 = vector.multi_reduction <add>, %5, %cst [1] : vector<64x32xf32> to vector<64xf32>
    %7 = vector.shape_cast %6 : vector<64xf32> to vector<64x1xf32>
    %cst_7 = arith.constant dense<0.000000e+00> : vector<64x32xf32>
    %8 = tpu.matmul %1, %4, %cst_7 {dimension_numbers = #tpu.dot_dimension_numbers<[1], [0], [0], [1], [0, 0, 1, 1], [], []>} : vector<64x32xf32>, vector<32x32xf32>, vector<64x32xf32> -> vector<64x32xf32>
    %c0_8 = arith.constant 0 : index
    %c0_9 = arith.constant 0 : index
    %9 = vector.load %arg4[%c0_8, %c0_9] : memref<1x32xf32, #tpu.memory_space<vmem>>, vector<1x32xf32>
    %10 = vector.broadcast %7 : vector<64x1xf32> to vector<64x32xf32>
    %11 = vector.broadcast %9 : vector<1x32xf32> to vector<64x32xf32>
    %12 = arith.addf %10, %11 : vector<64x32xf32>
    %cst_10 = arith.constant 2.000000e+00 : f32
    %13 = vector.broadcast %cst_10 : f32 to vector<64x32xf32>
    %14 = arith.mulf %13, %8 : vector<64x32xf32>
    %15 = arith.subf %12, %14 : vector<64x32xf32>
    %cst_11 = arith.constant 0.000000e+00 : f32
    %16 = vector.broadcast %cst_11 : f32 to vector<64x32xf32>
    %17 = arith.maximumf %15, %16 : vector<64x32xf32>
    %cst_12 = arith.constant 1.000000e+00 : f32
    %18 = vector.broadcast %cst_12 : f32 to vector<64x32xf32>
    %19 = arith.divf %17, %18 : vector<64x32xf32>
    %cst_13 = arith.constant 1.000000e+00 : f32
    %20 = vector.broadcast %cst_13 : f32 to vector<64x32xf32>
    %21 = arith.addf %20, %19 : vector<64x32xf32>
    %cst_14 = arith.constant 1.000000e+00 : f32
    %22 = vector.broadcast %cst_14 : f32 to vector<64x32xf32>
    %23 = arith.divf %22, %21 : vector<64x32xf32>
    %c0_15 = arith.constant 0 : index
    %c0_16 = arith.constant 0 : index
    %24 = vector.load %arg5[%c0_15, %c0_16] : memref<32x4xf32, #tpu.memory_space<vmem>>, vector<32x4xf32>
    %cst_17 = arith.constant dense<0.000000e+00> : vector<64x4xf32>
    %25 = tpu.matmul %23, %24, %cst_17 {dimension_numbers = #tpu.dot_dimension_numbers<[1], [0], [0], [1], [0, 0, 1, 1], [], []>} : vector<64x32xf32>, vector<32x4xf32>, vector<64x4xf32> -> vector<64x4xf32>
    %cst_18 = arith.constant 1.000000e+00 : f32
    %26 = vector.broadcast %cst_18 : f32 to vector<64x4xf32>
    %27 = arith.divf %26, %25 : vector<64x4xf32>
    %c0_19 = arith.constant 0 : index
    %c0_20 = arith.constant 0 : index
    %28 = vector.load %arg6[%c0_19, %c0_20] : memref<4x32xf32, #tpu.memory_space<vmem>>, vector<4x32xf32>
    %cst_21 = arith.constant dense<0.000000e+00> : vector<64x32xf32>
    %29 = tpu.matmul %27, %28, %cst_21 {dimension_numbers = #tpu.dot_dimension_numbers<[1], [0], [0], [1], [0, 0, 1, 1], [], []>} : vector<64x4xf32>, vector<4x32xf32>, vector<64x32xf32> -> vector<64x32xf32>
    %30 = arith.mulf %23, %29 : vector<64x32xf32>
    %c0_22 = arith.constant 0 : index
    %c0_23 = arith.constant 0 : index
    %31 = vector.load %arg7[%c0_22, %c0_23] : memref<32x8xf32, #tpu.memory_space<vmem>>, vector<32x8xf32>
    %cst_24 = arith.constant dense<0.000000e+00> : vector<64x8xf32>
    %32 = tpu.matmul %30, %31, %cst_24 {dimension_numbers = #tpu.dot_dimension_numbers<[1], [0], [0], [1], [0, 0, 1, 1], [], []>} : vector<64x32xf32>, vector<32x8xf32>, vector<64x8xf32> -> vector<64x8xf32>
    %cst_25 = arith.constant dense<0xFF800000> : vector<64xf32>
    %33 = vector.multi_reduction <maximumf>, %32, %cst_25 [1] : vector<64x8xf32> to vector<64xf32>
    %34 = vector.shape_cast %33 : vector<64xf32> to vector<64x1xf32>
    %35 = vector.broadcast %34 : vector<64x1xf32> to vector<64x8xf32>
    %36 = arith.subf %32, %35 : vector<64x8xf32>
    %37 = math.exp %36 : vector<64x8xf32>
    %cst_26 = arith.constant dense<0.000000e+00> : vector<64xf32>
    %38 = vector.multi_reduction <add>, %37, %cst_26 [1] : vector<64x8xf32> to vector<64xf32>
    %39 = vector.shape_cast %38 : vector<64xf32> to vector<64x1xf32>
    %40 = vector.broadcast %39 : vector<64x1xf32> to vector<64x8xf32>
    %41 = arith.divf %37, %40 : vector<64x8xf32>
    %42 = vector.broadcast %3 : vector<64x1xf32> to vector<64x8xf32>
    %43 = arith.mulf %41, %42 : vector<64x8xf32>
    %44 = vector.shape_cast %43 : vector<64x8xf32> to vector<4x16x8xf32>
    %c0_27 = arith.constant 0 : index
    %c0_28 = arith.constant 0 : index
    %c0_29 = arith.constant 0 : index
    %45 = vector.load %arg10[%c0_27, %c0_28, %c0_29] : memref<4x16x8xf32, #tpu.memory_space<vmem>>, vector<4x16x8xf32>
    tpu.vector_store %arg10[%c0_27, %c0_28, %c0_29], %44 {strides = array<i32>} : memref<4x16x8xf32, #tpu.memory_space<vmem>>, vector<4x16x8xf32>,
    "tpu.trace_start"() <{level = 10 : i32, message = "bnk,bnf->bkf"}> : () -> ()
    %cst_30 = arith.constant dense<0.000000e+00> : vector<4x8x32xf32>
    %46 = tpu.matmul %44, %0, %cst_30 {dimension_numbers = #tpu.dot_dimension_numbers<[1], [1], [2], [2], [0, 0, 0, 2, 1, 2], [0], [0]>} : vector<4x16x8xf32>, vector<4x16x32xf32>, vector<4x8x32xf32> -> vector<4x8x32xf32>
    "tpu.trace_stop"() : () -> ()
    %47 = vector.shape_cast %46 : vector<4x8x32xf32> to vector<32x32xf32>
    %c0_31 = arith.constant 0 : index
    %c0_32 = arith.constant 0 : index
    %48 = vector.load %arg8[%c0_31, %c0_32] : memref<32x16xf32, #tpu.memory_space<vmem>>, vector<32x16xf32>
    %cst_33 = arith.constant dense<0.000000e+00> : vector<32x16xf32>
    %49 = tpu.matmul %47, %48, %cst_33 {dimension_numbers = #tpu.dot_dimension_numbers<[1], [0], [0], [1], [0, 0, 1, 1], [], []>} : vector<32x32xf32>, vector<32x16xf32>, vector<32x16xf32> -> vector<32x16xf32>
    %50 = vector.shape_cast %49 : vector<32x16xf32> to vector<4x8x16xf32>
    %c0_34 = arith.constant 0 : index
    %c0_35 = arith.constant 0 : index
    %c0_36 = arith.constant 0 : index
    %51 = vector.load %arg9[%c0_34, %c0_35, %c0_36] : memref<4x8x16xf32, #tpu.memory_space<vmem>>, vector<4x8x16xf32>
    tpu.vector_store %arg9[%c0_34, %c0_35, %c0_36], %50 {strides = array<i32>} : memref<4x8x16xf32, #tpu.memory_space<vmem>>, vector<4x8x16xf32>,
    return
  }
  func.func @transform_0(%arg0: i32) -> (i32, i32, i32) {
    %c0_i32 = arith.constant 0 : i32
    %c0_i32_0 = arith.constant 0 : i32
    %c0_i32_1 = arith.constant 0 : i32
    return %arg0, %c0_i32, %c0_i32_0 : i32, i32, i32
  }
  func.func @transform_1(%arg0: i32) -> (i32, i32, i32) {
    %c0_i32 = arith.constant 0 : i32
    %c0_i32_0 = arith.constant 0 : i32
    %c0_i32_1 = arith.constant 0 : i32
    return %arg0, %c0_i32, %c0_i32_0 : i32, i32, i32
  }
  func.func @transform_2(%arg0: i32) -> (i32, i32) {
    %c0_i32 = arith.constant 0 : i32
    %c0_i32_0 = arith.constant 0 : i32
    %c0_i32_1 = arith.constant 0 : i32
    return %c0_i32, %c0_i32_0 : i32, i32
  }
  func.func @transform_3(%arg0: i32) -> (i32, i32) {
    %c0_i32 = arith.constant 0 : i32
    %c0_i32_0 = arith.constant 0 : i32
    %c0_i32_1 = arith.constant 0 : i32
    return %c0_i32, %c0_i32_0 : i32, i32
  }
  func.func @transform_4(%arg0: i32) -> (i32, i32) {
    %c0_i32 = arith.constant 0 : i32
    %c0_i32_0 = arith.constant 0 : i32
    %c0_i32_1 = arith.constant 0 : i32
    return %c0_i32, %c0_i32_0 : i32, i32
  }
  func.func @transform_5(%arg0: i32) -> (i32, i32) {
    %c0_i32 = arith.constant 0 : i32
    %c0_i32_0 = arith.constant 0 : i32
    %c0_i32_1 = arith.constant 0 : i32
    return %c0_i32, %c0_i32_0 : i32, i32
  }
  func.func @transform_6(%arg0: i32) -> (i32, i32) {
    %c0_i32 = arith.constant 0 : i32
    %c0_i32_0 = arith.constant 0 : i32
    %c0_i32_1 = arith.constant 0 : i32
    return %c0_i32, %c0_i32_0 : i32, i32
  }
  func.func @transform_7(%arg0: i32) -> (i32, i32) {
    %c0_i32 = arith.constant 0 : i32
    %c0_i32_0 = arith.constant 0 : i32
    %c0_i32_1 = arith.constant 0 : i32
    return %c0_i32, %c0_i32_0 : i32, i32
  }
  func.func @transform_8(%arg0: i32) -> (i32, i32, i32) {
    %c0_i32 = arith.constant 0 : i32
    %c0_i32_0 = arith.constant 0 : i32
    %c0_i32_1 = arith.constant 0 : i32
    return %arg0, %c0_i32, %c0_i32_0 : i32, i32, i32
  }
  func.func @transform_9(%arg0: i32) -> (i32, i32, i32) {
    %c0_i32 = arith.constant 0 : i32
    %c0_i32_0 = arith.constant 0 : i32
    %c0_i32_1 = arith.constant 0 : i32
    return %arg0, %c0_i32, %c0_i32_0 : i32, i32, i32
  }
}

</mosaic_0001>

<llo_original>
// kernel: tpu_custom_call.1
$region0: #{tpu_custom_call.1}
  #allocation0 [shape = 'u32[]', space=smem, size = 0x4, offset = 0x4, fixed_abs, tag = 'smem constant byte address 0x4 - core index']
  #allocation1 [shape = 'u32[144,128]{1,0:T(1,128)}', space=vmem, size = 0x12000, scoped, tag = 'internal scratch']
  %s0 = inlined_call_operand.vmem [shape: f32[8,16,32], index: 0, kind: input, shape index: {}]
  %s1 = inlined_call_operand.vmem [shape: f32[8,16,1], index: 1, kind: input, shape index: {}]
  %s2 = inlined_call_operand.vmem [shape: f32[32,32], index: 2, kind: input, shape index: {}]
  %s3 = inlined_call_operand.vmem [shape: f32[1,32], index: 3, kind: input, shape index: {}]
  %s4 = inlined_call_operand.vmem [shape: f32[32,4], index: 4, kind: input, shape index: {}]
  %s5 = inlined_call_operand.vmem [shape: f32[4,32], index: 5, kind: input, shape index: {}]
  %s6 = inlined_call_operand.vmem [shape: f32[32,8], index: 6, kind: input, shape index: {}]
  %s7 = inlined_call_operand.vmem [shape: f32[32,16], index: 7, kind: input, shape index: {}]
  %s8 = inlined_call_operand.hbm [shape: f32[8,8,16], index: 8, kind: output, shape index: {0}]
  %s9 = inlined_call_operand.vmem [shape: f32[8,16,8], index: 9, kind: output, shape index: {1}]
  %10 = xla_tuple %s8, %s9
  %s11 = sld [smem:[#allocation0]]
  $region73: #{tpu_custom_call.1} parent=0
    _
  %s13 = ssub.s32 1, %s11
  %s14 = scalar_select 0, %s13, %s11
  $region1: #{tpu_custom_call.1} parent=0
    #allocation2 [shape = 'u8[32768]{0}', space=vmem, size = 0x8000, scoped, tag = 'output window, operand 0']
    #allocation3 [shape = 's32[2]{0}', space=sflag, size = 0x8, scoped, tag = 'scoped memory for tpu_custom_call.1']
    %15 = vsyncpa [#allocation3], 0
    %s16 = scalar_lea.sflag [#allocation3], 1
    %17 = vsyncpa %s16, 0
    loop: start=0, step=1, limit=4
    $region2: #{tpu_custom_call.1} parent=1 // loop_pre_header
      _
    $region3: #{tpu_custom_call.1} parent=1 // loop_header
      %s19 = sphi 0, %s23
      %p20 = scmp.ge.s32.totalorder %s19, 4
      %s29 = sphi 0, %s31
      %s32 = sphi 0, %s29
      %s33 = sphi 0, %s32
      %s49 = sphi 0, %s33
      %s55 = sphi 0, %s57
      %s58 = sphi 0, %s55
      %s59 = sphi 0, %s58
      %s75 = sphi 0, %s59
      %s79 = sphi 0, %s79
      %s81 = sphi 0, %s79
      %s82 = sphi 0, %s81
      %s96 = sphi 0, %s82
      %s100 = sphi 0, %s100
      %s102 = sphi 0, %s100
      %s103 = sphi 0, %s102
      %s117 = sphi 0, %s103
      %s121 = sphi 0, %s121
      %s123 = sphi 0, %s121
      %s124 = sphi 0, %s123
      %s138 = sphi 0, %s124
      %s142 = sphi 0, %s142
      %s144 = sphi 0, %s142
      %s145 = sphi 0, %s144
      %s159 = sphi 0, %s145
      %s163 = sphi 0, %s163
      %s165 = sphi 0, %s163
      %s166 = sphi 0, %s165
      %s180 = sphi 0, %s166
      %s184 = sphi 0, %s184
      %s186 = sphi 0, %s184
      %s187 = sphi 0, %s186
      %s201 = sphi 0, %s187
      %s207 = sphi 0, %s209
      %s210 = sphi 0, %s207
      %s211 = sphi 0, %s210
      %s227 = sphi 0, %s211
      %s233 = sphi 0, %s235
      %s236 = sphi 0, %s233
      %s237 = sphi 0, %s236
      %s253 = sphi 0, %s237
    $region4: #{tpu_custom_call.1} parent=1 // loop_header_branch
      %22 = sbr.rel (%p20) target = $region8
    $region5: #{tpu_custom_call.1} parent=1 // loop_body
      %s24 = ssub.s32 %s19, 1
      %s25 = ssub.s32 %s19, 2
      %s26 = sadd.s32 %s19, 1
      %s27 = ssub.s32 %s19, %s26
      %p28 = scmp.eq.s32.totalorder %s27, 0
      %s30 = sadd.s32 %s29, 1
      %s31 = scalar_select %p28, %s29, %s30
      %p34 = pneg %p28
      %p35 = scmp.eq.s32.totalorder %s19, 1
      %p36 = por %p34, %p35
      %p37 = scmp.ne.s32.totalorder %s29, %s32
      %p38 = scmp.eq.s32.totalorder %s19, 0
      %p39 = por %p37, %p38
      %p40 = scmp.ne.s32.totalorder %s29, %s32
      %p41 = scmp.eq.s32.totalorder %s24, 1
      %p42 = por %p40, %p41
      %p43 = scmp.ne.s32.totalorder %s32, %s33
      %p44 = scmp.eq.s32.totalorder %s24, 0
      %p45 = por %p43, %p44
      %p46 = scmp.ne.s32.totalorder %s32, %s33
      %p47 = scmp.eq.s32.totalorder %s25, 1
      %p48 = por %p46, %p47
      %p50 = scmp.ne.s32.totalorder %s33, %s49
      %p51 = scmp.eq.s32.totalorder %s25, 0
      %p52 = por %p50, %p51
      %s53 = ssub.s32 %s19, %s26
      %p54 = scmp.eq.s32.totalorder %s53, 0
      %s56 = sadd.s32 %s55, 1
      %s57 = scalar_select %p54, %s55, %s56
      %p60 = pneg %p54
      %p61 = scmp.eq.s32.totalorder %s19, 1
      %p62 = por %p60, %p61
      %p63 = scmp.ne.s32.totalorder %s55, %s58
      %p64 = scmp.eq.s32.totalorder %s19, 0
      %p65 = por %p63, %p64
      %p66 = scmp.ne.s32.totalorder %s55, %s58
      %p67 = scmp.eq.s32.totalorder %s24, 1
      %p68 = por %p66, %p67
      %p69 = scmp.ne.s32.totalorder %s58, %s59
      %p70 = scmp.eq.s32.totalorder %s24, 0
      %p71 = por %p69, %p70
      %p72 = scmp.ne.s32.totalorder %s58, %s59
      %p73 = scmp.eq.s32.totalorder %s25, 1
      %p74 = por %p72, %p73
      %p76 = scmp.ne.s32.totalorder %s59, %s75
      %p77 = scmp.eq.s32.totalorder %s25, 0
      %p78 = por %p76, %p77
      %s80 = sadd.s32 %s79, 1
      %p83 = scmp.eq.s32.totalorder %s19, 1
      %p84 = scmp.ne.s32.totalorder %s79, %s81
      %p85 = scmp.eq.s32.totalorder %s19, 0
      %p86 = por %p84, %p85
      %p87 = scmp.ne.s32.totalorder %s79, %s81
      %p88 = scmp.eq.s32.totalorder %s24, 1
      %p89 = por %p87, %p88
      %p90 = scmp.ne.s32.totalorder %s81, %s82
      %p91 = scmp.eq.s32.totalorder %s24, 0
      %p92 = por %p90, %p91
      %p93 = scmp.ne.s32.totalorder %s81, %s82
      %p94 = scmp.eq.s32.totalorder %s25, 1
      %p95 = por %p93, %p94
      %p97 = scmp.ne.s32.totalorder %s82, %s96
      %p98 = scmp.eq.s32.totalorder %s25, 0
      %p99 = por %p97, %p98
      %s101 = sadd.s32 %s100, 1
      %p104 = scmp.eq.s32.totalorder %s19, 1
      %p105 = scmp.ne.s32.totalorder %s100, %s102
      %p106 = scmp.eq.s32.totalorder %s19, 0
      %p107 = por %p105, %p106
      %p108 = scmp.ne.s32.totalorder %s100, %s102
      %p109 = scmp.eq.s32.totalorder %s24, 1
      %p110 = por %p108, %p109
      %p111 = scmp.ne.s32.totalorder %s102, %s103
      %p112 = scmp.eq.s32.totalorder %s24, 0
      %p113 = por %p111, %p112
      %p114 = scmp.ne.s32.totalorder %s102, %s103
      %p115 = scmp.eq.s32.totalorder %s25, 1
      %p116 = por %p114, %p115
      %p118 = scmp.ne.s32.totalorder %s103, %s117
      %p119 = scmp.eq.s32.totalorder %s25, 0
      %p120 = por %p118, %p119
      %s122 = sadd.s32 %s121, 1
      %p125 = scmp.eq.s32.totalorder %s19, 1
      %p126 = scmp.ne.s32.totalorder %s121, %s123
      %p127 = scmp.eq.s32.totalorder %s19, 0
      %p128 = por %p126, %p127
      %p129 = scmp.ne.s32.totalorder %s121, %s123
      %p130 = scmp.eq.s32.totalorder %s24, 1
      %p131 = por %p129, %p130
      %p132 = scmp.ne.s32.totalorder %s123, %s124
      %p133 = scmp.eq.s32.totalorder %s24, 0
      %p134 = por %p132, %p133
      %p135 = scmp.ne.s32.totalorder %s123, %s124
      %p136 = scmp.eq.s32.totalorder %s25, 1
      %p137 = por %p135, %p136
      %p139 = scmp.ne.s32.totalorder %s124, %s138
      %p140 = scmp.eq.s32.totalorder %s25, 0
      %p141 = por %p139, %p140
      %s143 = sadd.s32 %s142, 1
      %p146 = scmp.eq.s32.totalorder %s19, 1
      %p147 = scmp.ne.s32.totalorder %s142, %s144
      %p148 = scmp.eq.s32.totalorder %s19, 0
      %p149 = por %p147, %p148
      %p150 = scmp.ne.s32.totalorder %s142, %s144
      %p151 = scmp.eq.s32.totalorder %s24, 1
      %p152 = por %p150, %p151
      %p153 = scmp.ne.s32.totalorder %s144, %s145
      %p154 = scmp.eq.s32.totalorder %s24, 0
      %p155 = por %p153, %p154
      %p156 = scmp.ne.s32.totalorder %s144, %s145
      %p157 = scmp.eq.s32.totalorder %s25, 1
      %p158 = por %p156, %p157
      %p160 = scmp.ne.s32.totalorder %s145, %s159
      %p161 = scmp.eq.s32.totalorder %s25, 0
      %p162 = por %p160, %p161
      %s164 = sadd.s32 %s163, 1
      %p167 = scmp.eq.s32.totalorder %s19, 1
      %p168 = scmp.ne.s32.totalorder %s163, %s165
      %p169 = scmp.eq.s32.totalorder %s19, 0
      %p170 = por %p168, %p169
      %p171 = scmp.ne.s32.totalorder %s163, %s165
      %p172 = scmp.eq.s32.totalorder %s24, 1
      %p173 = por %p171, %p172
      %p174 = scmp.ne.s32.totalorder %s165, %s166
      %p175 = scmp.eq.s32.totalorder %s24, 0
      %p176 = por %p174, %p175
      %p177 = scmp.ne.s32.totalorder %s165, %s166
      %p178 = scmp.eq.s32.totalorder %s25, 1
      %p179 = por %p177, %p178
      %p181 = scmp.ne.s32.totalorder %s166, %s180
      %p182 = scmp.eq.s32.totalorder %s25, 0
      %p183 = por %p181, %p182
      %s185 = sadd.s32 %s184, 1
      %p188 = scmp.eq.s32.totalorder %s19, 1
      %p189 = scmp.ne.s32.totalorder %s184, %s186
      %p190 = scmp.eq.s32.totalorder %s19, 0
      %p191 = por %p189, %p190
      %p192 = scmp.ne.s32.totalorder %s184, %s186
      %p193 = scmp.eq.s32.totalorder %s24, 1
      %p194 = por %p192, %p193
      %p195 = scmp.ne.s32.totalorder %s186, %s187
      %p196 = scmp.eq.s32.totalorder %s24, 0
      %p197 = por %p195, %p196
      %p198 = scmp.ne.s32.totalorder %s186, %s187
      %p199 = scmp.eq.s32.totalorder %s25, 1
      %p200 = por %p198, %p199
      %p202 = scmp.ne.s32.totalorder %s187, %s201
      %p203 = scmp.eq.s32.totalorder %s25, 0
      %p204 = por %p202, %p203
      %s205 = ssub.s32 %s19, %s26
      %p206 = scmp.eq.s32.totalorder %s205, 0
      %s208 = sadd.s32 %s207, 1
      %s209 = scalar_select %p206, %s207, %s208
      %p212 = pneg %p206
      %p213 = scmp.eq.s32.totalorder %s19, 1
      %p214 = por %p212, %p213
      %p215 = scmp.ne.s32.totalorder %s207, %s210
      %p216 = scmp.eq.s32.totalorder %s19, 0
      %p217 = por %p215, %p216
      %p218 = scmp.ne.s32.totalorder %s207, %s210
      %p219 = scmp.eq.s32.totalorder %s24, 1
      %p220 = por %p218, %p219
      %p221 = scmp.ne.s32.totalorder %s210, %s211
      %p222 = scmp.eq.s32.totalorder %s24, 0
      %p223 = por %p221, %p222
      %p224 = scmp.ne.s32.totalorder %s210, %s211
      %p225 = scmp.eq.s32.totalorder %s25, 1
      %p226 = por %p224, %p225
      %p228 = scmp.ne.s32.totalorder %s211, %s227
      %p229 = scmp.eq.s32.totalorder %s25, 0
      %p230 = por %p228, %p229
      %s231 = ssub.s32 %s19, %s26
      %p232 = scmp.eq.s32.totalorder %s231, 0
      %s234 = sadd.s32 %s233, 1
      %s235 = scalar_select %p232, %s233, %s234
      %p238 = pneg %p232
      %p239 = scmp.eq.s32.totalorder %s19, 1
      %p240 = por %p238, %p239
      %p241 = scmp.ne.s32.totalorder %s233, %s236
      %p242 = scmp.eq.s32.totalorder %s19, 0
      %p243 = por %p241, %p242
      %p244 = scmp.ne.s32.totalorder %s233, %s236
      %p245 = scmp.eq.s32.totalorder %s24, 1
      %p246 = por %p244, %p245
      %p247 = scmp.ne.s32.totalorder %s236, %s237
      %p248 = scmp.eq.s32.totalorder %s24, 0
      %p249 = por %p247, %p248
      %p250 = scmp.ne.s32.totalorder %s236, %s237
      %p251 = scmp.eq.s32.totalorder %s25, 1
      %p252 = por %p250, %p251
      %p254 = scmp.ne.s32.totalorder %s237, %s253
      %p255 = scmp.eq.s32.totalorder %s25, 0
      %p256 = por %p254, %p255
      %p257 = scmp.le.s32.totalorder 1, %s19
      %p258 = scmp.lt.s32.totalorder %s19, 3
      %p259 = pnand %p257, %p258
      %p260 = pneg %p259
      // Predicated region
      $region9: #{tpu_custom_call.1} parent=5 // pred_check
        _
      $region10: #{tpu_custom_call.1} parent=5 // pred_check_branch
        %262 = sbr.rel (%p259) target = $region12
      $region11: #{tpu_custom_call.1} parent=5 // pred_region
        %s263 = ssub.s32 %s19, 1
        // Predicated region
        $region13: #{tpu_custom_call.1} parent=11 // pred_check
          %p264 = pneg %p92
        $region14: #{tpu_custom_call.1} parent=11 // pred_check_branch
          %266 = sbr.rel (%p264) target = $region16
        $region15: #{tpu_custom_call.1} parent=11 // pred_region
          _
        $region16: #{tpu_custom_call.1} parent=11 // pred_fallthru
          _
        // Predicated region
        $region17: #{tpu_custom_call.1} parent=11 // pred_check
          %p267 = pneg %p113
        $region18: #{tpu_custom_call.1} parent=11 // pred_check_branch
          %269 = sbr.rel (%p267) target = $region20
        $region19: #{tpu_custom_call.1} parent=11 // pred_region
          _
        $region20: #{tpu_custom_call.1} parent=11 // pred_fallthru
          _
        // Predicated region
        $region21: #{tpu_custom_call.1} parent=11 // pred_check
          %p270 = pneg %p134
        $region22: #{tpu_custom_call.1} parent=11 // pred_check_branch
          %272 = sbr.rel (%p270) target = $region24
        $region23: #{tpu_custom_call.1} parent=11 // pred_region
          _
        $region24: #{tpu_custom_call.1} parent=11 // pred_fallthru
          _
        // Predicated region
        $region25: #{tpu_custom_call.1} parent=11 // pred_check
          %p273 = pneg %p155
        $region26: #{tpu_custom_call.1} parent=11 // pred_check_branch
          %275 = sbr.rel (%p273) target = $region28
        $region27: #{tpu_custom_call.1} parent=11 // pred_region
          _
        $region28: #{tpu_custom_call.1} parent=11 // pred_fallthru
          _
        // Predicated region
        $region29: #{tpu_custom_call.1} parent=11 // pred_check
          %p276 = pneg %p176
        $region30: #{tpu_custom_call.1} parent=11 // pred_check_branch
          %278 = sbr.rel (%p276) target = $region32
        $region31: #{tpu_custom_call.1} parent=11 // pred_region
          _
        $region32: #{tpu_custom_call.1} parent=11 // pred_fallthru
          _
        // Predicated region
        $region33: #{tpu_custom_call.1} parent=11 // pred_check
          %p279 = pneg %p197
        $region34: #{tpu_custom_call.1} parent=11 // pred_check_branch
          %281 = sbr.rel (%p279) target = $region36
        $region35: #{tpu_custom_call.1} parent=11 // pred_region
          _
        $region36: #{tpu_custom_call.1} parent=11 // pred_fallthru
          _
      $region12: #{tpu_custom_call.1} parent=5 // pred_fallthru
        _
      %p282 = scmp.lt.s32.totalorder %s19, 2
      // Predicated region
      $region37: #{tpu_custom_call.1} parent=5 // pred_check
        %p283 = pneg %p282
      $region38: #{tpu_custom_call.1} parent=5 // pred_check_branch
        %285 = sbr.rel (%p283) target = $region40
      $region39: #{tpu_custom_call.1} parent=5 // pred_region
        // Predicated region
        $region41: #{tpu_custom_call.1} parent=39 // pred_check
          %p286 = pneg %p39
        $region42: #{tpu_custom_call.1} parent=39 // pred_check_branch
          %288 = sbr.rel (%p286) target = $region44
        $region43: #{tpu_custom_call.1} parent=39 // pred_region
          %s289 = smul.u32 4, %s19
          %p290 = scmp.lt.s32.totalorder %s289, 7
          %s291 = scalar_select %p290, %s289, 7
          %s292 = smul.addr %s291, 2
          %s293 = smul.addr %s292, 8
          %s294 = scalar_lea.vmem %s0, %s293
          %s295 = smul.u32 4, %s19
        $region44: #{tpu_custom_call.1} parent=39 // pred_fallthru
          _
        // Predicated region
        $region45: #{tpu_custom_call.1} parent=39 // pred_check
          %p296 = pneg %p65
        $region46: #{tpu_custom_call.1} parent=39 // pred_check_branch
          %298 = sbr.rel (%p296) target = $region48
        $region47: #{tpu_custom_call.1} parent=39 // pred_region
          %s299 = smul.u32 4, %s19
          %p300 = scmp.lt.s32.totalorder %s299, 7
          %s301 = scalar_select %p300, %s299, 7
          %s302 = smul.addr %s301, 2
          %s303 = smul.addr %s302, 8
          %s304 = scalar_lea.vmem %s1, %s303
          %s305 = smul.u32 4, %s19
        $region48: #{tpu_custom_call.1} parent=39 // pred_fallthru
          _
      $region40: #{tpu_custom_call.1} parent=5 // pred_fallthru
        _
      %p306 = scmp.le.s32.totalorder 1, %s19
      %p307 = scmp.lt.s32.totalorder %s19, 3
      %p308 = pnand %p306, %p307
      %p309 = pneg %p308
      // Predicated region
      $region49: #{tpu_custom_call.1} parent=5 // pred_check
        _
      $region50: #{tpu_custom_call.1} parent=5 // pred_check_branch
        %311 = sbr.rel (%p308) target = $region52
      $region51: #{tpu_custom_call.1} parent=5 // pred_region
        %s312 = ssub.s32 %s19, 1
        %s313 = smul.u32 4, %s24
        %p314 = scmp.lt.s32.totalorder %s313, 7
        %s315 = scalar_select %p314, %s313, 7
        %s316 = smul.addr %s315, 2
        %s317 = smul.addr %s316, 8
        %s318 = scalar_lea.vmem %s0, %s317
        %p319 = pneg %p45
        %p320 = pneg %p42
        %s321 = smul.u32 4, %s24
        %p322 = scmp.lt.s32.totalorder %s321, 7
        %s323 = scalar_select %p322, %s321, 7
        %s324 = smul.addr %s323, 2
        %s325 = smul.addr %s324, 8
        %s326 = scalar_lea.vmem %s1, %s325
        %p327 = pneg %p71
        %p328 = pneg %p68
        %p329 = pneg %p92
        %p330 = pneg %p89
        %p331 = pneg %p113
        %p332 = pneg %p110
        %p333 = pneg %p134
        %p334 = pneg %p131
        %p335 = pneg %p155
        %p336 = pneg %p152
        %p337 = pneg %p176
        %p338 = pneg %p173
        %p339 = pneg %p197
        %p340 = pneg %p194
        %p341 = pneg %p223
        %p342 = pneg %p220
        %s343 = sand.u32 %s210, 1
        %s344 = scalar_lea.sflag [#allocation3], %s343
        %s345 = sand.u32 %s210, 1
        %s346 = smul.addr %s345, 32
        %s347 = scalar_lea.vmem [#allocation2], %s346
        %p348 = pneg %p249
        %p349 = pneg %p246
        %s350 = smul.u32 4, %s24
        %p351 = scmp.lt.s32.totalorder %s350, 7
        %s352 = scalar_select %p351, %s350, 7
        %s353 = smul.addr %s352, 2
        %s354 = smul.addr %s353, 8
        %s355 = scalar_lea.vmem %s9, %s354
        %s356 = smul.u32 4, %s24
        %p357 = scmp.lt.s32.totalorder %s356, 7
        %s358 = scalar_select %p357, %s356, 7
        %s359 = smul.addr %s358, 2
        %s360 = smul.addr %s359, 8
        %s361 = scalar_lea.vmem %s0, %s360
        %s362 = smul.u32 4, %s24
        %s363 = smul.u32 4, %s24
        %p364 = scmp.lt.s32.totalorder %s363, 7
        %s365 = scalar_select %p364, %s363, 7
        %s366 = smul.addr %s365, 2
        %s367 = smul.addr %s366, 8
        %s368 = scalar_lea.vmem %s1, %s367
        %s369 = smul.u32 4, %s24
        %s370 = smul.u32 4, %s24
        %s371 = smul.u32 4, %s24
        %p372 = scmp.lt.s32.totalorder %s371, 7
        %s373 = scalar_select %p372, %s371, 7
        %s374 = smul.addr %s373, 2
        %s375 = smul.addr %s374, 8
        %s376 = scalar_lea.vmem %s9, %s375
        %s377 = smul.u32 4, %s24
        %v378 = vld [vmem:[%s361] sm:$0xff]
        %v379 = vld [vmem:[%s361 + $0x8] sm:$0xff]
        %v380 = vld [vmem:[%s361 + $0x10] sm:$0xff]
        %v381 = vld [vmem:[%s361 + $0x18] sm:$0xff]
        %v382 = vld [vmem:[%s361 + $0x20] sm:$0xff]
        %v383 = vld [vmem:[%s361 + $0x28] sm:$0xff]
        %v384 = vld [vmem:[%s361 + $0x30] sm:$0xff]
        %v385 = vld [vmem:[%s361 + $0x38] sm:$0xff]
        %v386 = vld [vmem:[%s368] sm:$0xff]
        %v387 = vld [vmem:[%s368 + $0x8] sm:$0xff]
        %v388 = vld [vmem:[%s368 + $0x10] sm:$0xff]
        %v389 = vld [vmem:[%s368 + $0x18] sm:$0xff]
        %v390 = vld [vmem:[%s368 + $0x20] sm:$0xff]
        %v391 = vld [vmem:[%s368 + $0x28] sm:$0xff]
        %v392 = vld [vmem:[%s368 + $0x30] sm:$0xff]
        %v393 = vld [vmem:[%s368 + $0x38] sm:$0xff]
        %v394 = vld [vmem:[%s2] sm:$0xff]
        %v395 = vld [vmem:[%s2 + $0x8] sm:$0xff]
        %v396 = vld [vmem:[%s2 + $0x10] sm:$0xff]
        %v397 = vld [vmem:[%s2 + $0x18] sm:$0xff]
        %v398 = vmul.f32 %v378, %v378
        %v399 = vmul.f32 %v379, %v379
        %v400 = vmul.f32 %v380, %v380
        %v401 = vmul.f32 %v381, %v381
        %v402 = vmul.f32 %v382, %v382
        %v403 = vmul.f32 %v383, %v383
        %v404 = vmul.f32 %v384, %v384
        %v405 = vmul.f32 %v385, %v385
        %vm406 = vcmask 261120
        %v407 = vsel %vm406, %v398, 0.0
        %408 = vadd.xlane.f32.xlu0 %v407
        %v409 = vpop.xlane.xlu0 %408
        %v410 = vsel %vm406, %v399, 0.0
        %411 = vadd.xlane.f32.xlu0 %v410
        %v412 = vpop.xlane.xlu0 %411
        %v413 = vsel %vm406, %v400, 0.0
        %414 = vadd.xlane.f32.xlu0 %v413
        %v415 = vpop.xlane.xlu0 %414
        %v416 = vsel %vm406, %v401, 0.0
        %417 = vadd.xlane.f32.xlu0 %v416
        %v418 = vpop.xlane.xlu0 %417
        %v419 = vsel %vm406, %v402, 0.0
        %420 = vadd.xlane.f32.xlu0 %v419
        %v421 = vpop.xlane.xlu0 %420
        %v422 = vsel %vm406, %v403, 0.0
        %423 = vadd.xlane.f32.xlu0 %v422
        %v424 = vpop.xlane.xlu0 %423
        %v425 = vsel %vm406, %v404, 0.0
        %426 = vadd.xlane.f32.xlu0 %v425
        %v427 = vpop.xlane.xlu0 %426
        %v428 = vsel %vm406, %v405, 0.0
        %429 = vadd.xlane.f32.xlu0 %v428
        %v430 = vpop.xlane.xlu0 %429
        %v432 = vsel %vm406, %v378, 0
        %v435 = vsel %vm406, %v379, 0
        %v438 = vsel %vm406, %v380, 0
        %v441 = vsel %vm406, %v381, 0
        %v444 = vsel %vm406, %v382, 0
        %v447 = vsel %vm406, %v383, 0
        %v450 = vsel %vm406, %v384, 0
        %v453 = vsel %vm406, %v385, 0
        %455 = vmatprep.subr.mxu0 0.0
        %456 = vmatpush1.msra.mxu0 0.0
        %457 = vmatprep.subr.mxu0 0.0
        %458 = vmatpush1.msra.mxu0 0.0
        %459 = vmatprep.subr.mxu0 0.0
        %460 = vmatpush1.msra.mxu0 0.0
        %461 = vmatprep.subr.mxu0 0.0
        %462 = vmatpush1.msra.mxu0 0.0
        %463 = vmatprep.subr.mxu0 0.0
        %464 = vmatpush1.msra.mxu0 0.0
        %465 = vmatprep.subr.mxu0 0.0
        %466 = vmatpush1.msra.mxu0 0.0
        %467 = vmatprep.subr.mxu0 0.0
        %468 = vmatpush1.msra.mxu0 0.0
        %469 = vmatprep.subr.mxu0 0.0
        %470 = vmatpush1.msra.mxu0 0.0
        %471 = vmatprep.subr.mxu0 0.0
        %472 = vmatpush1.msra.mxu0 0.0
        %473 = vmatprep.subr.mxu0 0.0
        %474 = vmatpush1.msra.mxu0 0.0
        %475 = vmatprep.subr.mxu0 0.0
        %476 = vmatpush1.msra.mxu0 0.0
        %477 = vmatprep.subr.mxu0 0.0
        %478 = vmatpush1.msra.mxu0 0.0
        %479 = vmatprep.subr.mxu0 0.0
        %480 = vmatpush1.msra.mxu0 %v397
        %481 = vmatprep.subr.mxu0 0.0
        %482 = vmatpush1.msra.mxu0 %v396
        %483 = vmatprep.subr.mxu0 0.0
        %484 = vmatpush1.msra.mxu0 %v395
        %485 = vmatprep.subr.mxu0 0.0
        %486 = vmatpush1.msra.mxu0 %v394
        %487 = vmatprep.subr.mxu0 0.0
        %488 = vmatpush2.msra.mxu0 0.0
        %489 = vmatprep.subr.mxu0 0.0
        %490 = vmatpush2.msra.mxu0 0.0
        %491 = vmatprep.subr.mxu0 0.0
        %492 = vmatpush2.msra.mxu0 0.0
        %493 = vmatprep.subr.mxu0 0.0
        %494 = vmatpush2.msra.mxu0 0.0
        %495 = vmatprep.subr.mxu0 0.0
        %496 = vmatpush2.msra.mxu0 0.0
        %497 = vmatprep.subr.mxu0 0.0
        %498 = vmatpush2.msra.mxu0 0.0
        %499 = vmatprep.subr.mxu0 0.0
        %500 = vmatpush2.msra.mxu0 0.0
        %501 = vmatprep.subr.mxu0 0.0
        %502 = vmatpush2.msra.mxu0 0.0
        %503 = vmatprep.subr.mxu0 0.0
        %504 = vmatpush2.msra.mxu0 0.0
        %505 = vmatprep.subr.mxu0 0.0
        %506 = vmatpush2.msra.mxu0 0.0
        %507 = vmatprep.subr.mxu0 0.0
        %508 = vmatpush2.msra.mxu0 0.0
        %509 = vmatprep.subr.mxu0 0.0
        %510 = vmatpush2.msra.mxu0 0.0
        %511 = vmatprep.subr.mxu0 0.0
        %512 = vmatpush2.msra.mxu0 0.0
        %513 = vmatprep.subr.mxu0 0.0
        %514 = vmatpush2.msra.mxu0 0.0
        %515 = vmatprep.subr.mxu0 0.0
        %516 = vmatpush2.msra.mxu0 0.0
        %517 = vmatprep.subr.mxu0 0.0
        %518 = vmatpush2.msra.mxu0 0.0
        %519 = vmatprep.mubr.f32.mxu0 0.0
        %520 = vmatmul.mubr.f32.gmra.mxu0 %v432
        %v521 = vpop.f32.mrf.mxu0
        %v522 = vadd.f32 0.0, %v521
        %v523 = vpop.f32.mrf.mxu0
        %524 = vmatprep.mubr.f32.mxu0 0.0
        %525 = vmatmul.mubr.f32.gmra.mxu0 %v435
        %v526 = vpop.f32.mrf.mxu0
        %v527 = vadd.f32 0.0, %v526
        %v528 = vpop.f32.mrf.mxu0
        %529 = vmatprep.mubr.f32.mxu0 0.0
        %530 = vmatmul.mubr.f32.gmra.mxu0 %v438
        %v531 = vpop.f32.mrf.mxu0
        %v532 = vadd.f32 0.0, %v531
        %v533 = vpop.f32.mrf.mxu0
        %534 = vmatprep.mubr.f32.mxu0 0.0
        %535 = vmatmul.mubr.f32.gmra.mxu0 %v441
        %v536 = vpop.f32.mrf.mxu0
        %v537 = vadd.f32 0.0, %v536
        %v538 = vpop.f32.mrf.mxu0
        %539 = vmatprep.mubr.f32.mxu0 0.0
        %540 = vmatmul.mubr.f32.gmra.mxu0 %v444
        %v541 = vpop.f32.mrf.mxu0
        %v542 = vadd.f32 0.0, %v541
        %v543 = vpop.f32.mrf.mxu0
        %544 = vmatprep.mubr.f32.mxu0 0.0
        %545 = vmatmul.mubr.f32.gmra.mxu0 %v447
        %v546 = vpop.f32.mrf.mxu0
        %v547 = vadd.f32 0.0, %v546
        %v548 = vpop.f32.mrf.mxu0
        %549 = vmatprep.mubr.f32.mxu0 0.0
        %550 = vmatmul.mubr.f32.gmra.mxu0 %v450
        %v551 = vpop.f32.mrf.mxu0
        %v552 = vadd.f32 0.0, %v551
        %v553 = vpop.f32.mrf.mxu0
        %554 = vmatprep.mubr.f32.mxu0 0.0
        %555 = vmatmul.mubr.f32.gmra.mxu0 %v453
        %v556 = vpop.f32.mrf.mxu0
        %v557 = vadd.f32 0.0, %v556
        %v558 = vpop.f32.mrf.mxu0
        %559 = vdwg.mxu0
        %v560 = vld [vmem:[%s3] sm:$0x1]
        %v562 = vlaneseq
        %v563 = vshrl.u32 %v562, 7
        %v564 = vsub.s32 0, %v563
        %v565 = vrot.slane %v560, %v564
        %v567 = vadd.f32 %v409, %v565
        %v568 = vadd.f32 %v412, %v565
        %v569 = vadd.f32 %v415, %v565
        %v570 = vadd.f32 %v418, %v565
        %v571 = vadd.f32 %v421, %v565
        %v572 = vadd.f32 %v424, %v565
        %v573 = vadd.f32 %v427, %v565
        %v574 = vadd.f32 %v430, %v565
        %v575 = vmul.f32 %v522, 2.0
        %v576 = vmul.f32 %v527, 2.0
        %v577 = vmul.f32 %v532, 2.0
        %v578 = vmul.f32 %v537, 2.0
        %v579 = vmul.f32 %v542, 2.0
        %v580 = vmul.f32 %v547, 2.0
        %v581 = vmul.f32 %v552, 2.0
        %v582 = vmul.f32 %v557, 2.0
        %v583 = vsub.f32 %v567, %v575
        %v584 = vsub.f32 %v568, %v576
        %v585 = vsub.f32 %v569, %v577
        %v586 = vsub.f32 %v570, %v578
        %v587 = vsub.f32 %v571, %v579
        %v588 = vsub.f32 %v572, %v580
        %v589 = vsub.f32 %v573, %v581
        %v590 = vsub.f32 %v574, %v582
        %v591 = vmax.f32 %v583, 0.0
        %v592 = vmax.f32 %v584, 0.0
        %v593 = vmax.f32 %v585, 0.0
        %v594 = vmax.f32 %v586, 0.0
        %v595 = vmax.f32 %v587, 0.0
        %v596 = vmax.f32 %v588, 0.0
        %v597 = vmax.f32 %v589, 0.0
        %v598 = vmax.f32 %v590, 0.0
        %v599 = vadd.f32 %v591, 1.0
        %v600 = vadd.f32 %v592, 1.0
        %v601 = vadd.f32 %v593, 1.0
        %v602 = vadd.f32 %v594, 1.0
        %v603 = vadd.f32 %v595, 1.0
        %v604 = vadd.f32 %v596, 1.0
        %v605 = vadd.f32 %v597, 1.0
        %v606 = vadd.f32 %v598, 1.0
        %v607 = vrcp.pop %v599
        %v608 = vmul.f32 1.0, %v607
        %v609 = vrcp.pop %v600
        %v610 = vmul.f32 1.0, %v609
        %v611 = vrcp.pop %v601
        %v612 = vmul.f32 1.0, %v611
        %v613 = vrcp.pop %v602
        %v614 = vmul.f32 1.0, %v613
        %v615 = vrcp.pop %v603
        %v616 = vmul.f32 1.0, %v615
        %v617 = vrcp.pop %v604
        %v618 = vmul.f32 1.0, %v617
        %v619 = vrcp.pop %v605
        %v620 = vmul.f32 1.0, %v619
        %v621 = vrcp.pop %v606
        %v622 = vmul.f32 1.0, %v621
        %v623 = vld [vmem:[%s4] sm:$0xff]
        %v624 = vld [vmem:[%s4 + $0x8] sm:$0xff]
        %v625 = vld [vmem:[%s4 + $0x10] sm:$0xff]
        %v626 = vld [vmem:[%s4 + $0x18] sm:$0xff]
        %v628 = vsel %vm406, %v608, 0
        %v631 = vsel %vm406, %v610, 0
        %v634 = vsel %vm406, %v612, 0
        %v637 = vsel %vm406, %v614, 0
        %v640 = vsel %vm406, %v616, 0
        %v643 = vsel %vm406, %v618, 0
        %v646 = vsel %vm406, %v620, 0
        %v649 = vsel %vm406, %v622, 0
        %651 = vmatprep.subr.mxu0 0.0
        %652 = vmatpush1.msra.mxu0 0.0
        %653 = vmatprep.subr.mxu0 0.0
        %654 = vmatpush1.msra.mxu0 0.0
        %655 = vmatprep.subr.mxu0 0.0
        %656 = vmatpush1.msra.mxu0 0.0
        %657 = vmatprep.subr.mxu0 0.0
        %658 = vmatpush1.msra.mxu0 0.0
        %659 = vmatprep.subr.mxu0 0.0
        %660 = vmatpush1.msra.mxu0 0.0
        %661 = vmatprep.subr.mxu0 0.0
        %662 = vmatpush1.msra.mxu0 0.0
        %663 = vmatprep.subr.mxu0 0.0
        %664 = vmatpush1.msra.mxu0 0.0
        %665 = vmatprep.subr.mxu0 0.0
        %666 = vmatpush1.msra.mxu0 0.0
        %667 = vmatprep.subr.mxu0 0.0
        %668 = vmatpush1.msra.mxu0 0.0
        %669 = vmatprep.subr.mxu0 0.0
        %670 = vmatpush1.msra.mxu0 0.0
        %671 = vmatprep.subr.mxu0 0.0
        %672 = vmatpush1.msra.mxu0 0.0
        %673 = vmatprep.subr.mxu0 0.0
        %674 = vmatpush1.msra.mxu0 0.0
        %675 = vmatprep.subr.mxu0 0.0
        %676 = vmatpush1.msra.mxu0 %v626
        %677 = vmatprep.subr.mxu0 0.0
        %678 = vmatpush1.msra.mxu0 %v625
        %679 = vmatprep.subr.mxu0 0.0
        %680 = vmatpush1.msra.mxu0 %v624
        %681 = vmatprep.subr.mxu0 0.0
        %682 = vmatpush1.msra.mxu0 %v623
        %683 = vmatprep.subr.mxu0 0.0
        %684 = vmatpush2.msra.mxu0 0.0
        %685 = vmatprep.subr.mxu0 0.0
        %686 = vmatpush2.msra.mxu0 0.0
        %687 = vmatprep.subr.mxu0 0.0
        %688 = vmatpush2.msra.mxu0 0.0
        %689 = vmatprep.subr.mxu0 0.0
        %690 = vmatpush2.msra.mxu0 0.0
        %691 = vmatprep.subr.mxu0 0.0
        %692 = vmatpush2.msra.mxu0 0.0
        %693 = vmatprep.subr.mxu0 0.0
        %694 = vmatpush2.msra.mxu0 0.0
        %695 = vmatprep.subr.mxu0 0.0
        %696 = vmatpush2.msra.mxu0 0.0
        %697 = vmatprep.subr.mxu0 0.0
        %698 = vmatpush2.msra.mxu0 0.0
        %699 = vmatprep.subr.mxu0 0.0
        %700 = vmatpush2.msra.mxu0 0.0
        %701 = vmatprep.subr.mxu0 0.0
        %702 = vmatpush2.msra.mxu0 0.0
        %703 = vmatprep.subr.mxu0 0.0
        %704 = vmatpush2.msra.mxu0 0.0
        %705 = vmatprep.subr.mxu0 0.0
        %706 = vmatpush2.msra.mxu0 0.0
        %707 = vmatprep.subr.mxu0 0.0
        %708 = vmatpush2.msra.mxu0 0.0
        %709 = vmatprep.subr.mxu0 0.0
        %710 = vmatpush2.msra.mxu0 0.0
        %711 = vmatprep.subr.mxu0 0.0
        %712 = vmatpush2.msra.mxu0 0.0
        %713 = vmatprep.subr.mxu0 0.0
        %714 = vmatpush2.msra.mxu0 0.0
        %715 = vmatprep.mubr.f32.mxu0 0.0
        %716 = vmatmul.mubr.f32.gmra.mxu0 %v628
        %v717 = vpop.f32.mrf.mxu0
        %v718 = vadd.f32 0.0, %v717
        %v719 = vpop.f32.mrf.mxu0
        %720 = vmatprep.mubr.f32.mxu0 0.0
        %721 = vmatmul.mubr.f32.gmra.mxu0 %v631
        %v722 = vpop.f32.mrf.mxu0
        %v723 = vadd.f32 0.0, %v722
        %v724 = vpop.f32.mrf.mxu0
        %725 = vmatprep.mubr.f32.mxu0 0.0
        %726 = vmatmul.mubr.f32.gmra.mxu0 %v634
        %v727 = vpop.f32.mrf.mxu0
        %v728 = vadd.f32 0.0, %v727
        %v729 = vpop.f32.mrf.mxu0
        %730 = vmatprep.mubr.f32.mxu0 0.0
        %731 = vmatmul.mubr.f32.gmra.mxu0 %v637
        %v732 = vpop.f32.mrf.mxu0
        %v733 = vadd.f32 0.0, %v732
        %v734 = vpop.f32.mrf.mxu0
        %735 = vmatprep.mubr.f32.mxu0 0.0
        %736 = vmatmul.mubr.f32.gmra.mxu0 %v640
        %v737 = vpop.f32.mrf.mxu0
        %v738 = vadd.f32 0.0, %v737
        %v739 = vpop.f32.mrf.mxu0
        %740 = vmatprep.mubr.f32.mxu0 0.0
        %741 = vmatmul.mubr.f32.gmra.mxu0 %v643
        %v742 = vpop.f32.mrf.mxu0
        %v743 = vadd.f32 0.0, %v742
        %v744 = vpop.f32.mrf.mxu0
        %745 = vmatprep.mubr.f32.mxu0 0.0
        %746 = vmatmul.mubr.f32.gmra.mxu0 %v646
        %v747 = vpop.f32.mrf.mxu0
        %v748 = vadd.f32 0.0, %v747
        %v749 = vpop.f32.mrf.mxu0
        %750 = vmatprep.mubr.f32.mxu0 0.0
        %751 = vmatmul.mubr.f32.gmra.mxu0 %v649
        %v752 = vpop.f32.mrf.mxu0
        %v753 = vadd.f32 0.0, %v752
        %v754 = vpop.f32.mrf.mxu0
        %755 = vdwg.mxu0
        %v756 = vrcp.pop %v718
        %v757 = vmul.f32 1.0, %v756
        %v758 = vrcp.pop %v723
        %v759 = vmul.f32 1.0, %v758
        %v760 = vrcp.pop %v728
        %v761 = vmul.f32 1.0, %v760
        %v762 = vrcp.pop %v733
        %v763 = vmul.f32 1.0, %v762
        %v764 = vrcp.pop %v738
        %v765 = vmul.f32 1.0, %v764
        %v766 = vrcp.pop %v743
        %v767 = vmul.f32 1.0, %v766
        %v768 = vrcp.pop %v748
        %v769 = vmul.f32 1.0, %v768
        %v770 = vrcp.pop %v753
        %v771 = vmul.f32 1.0, %v770
        %v772 = vld [vmem:[%s5] sm:$0xf]
        %vm773 = vcmask 31744
        %v775 = vsel %vm773, %v757, 0
        %v778 = vsel %vm773, %v759, 0
        %v781 = vsel %vm773, %v761, 0
        %v784 = vsel %vm773, %v763, 0
        %v787 = vsel %vm773, %v765, 0
        %v790 = vsel %vm773, %v767, 0
        %v793 = vsel %vm773, %v769, 0
        %v796 = vsel %vm773, %v771, 0
        %vm798 = vcmask 1043456
        %v800 = vsel %vm798, %v772, 0
        %802 = vmatprep.subr.mxu0 0.0
        %803 = vmatpush1.msra.mxu0 0.0
        %804 = vmatprep.subr.mxu0 0.0
        %805 = vmatpush1.msra.mxu0 0.0
        %806 = vmatprep.subr.mxu0 0.0
        %807 = vmatpush1.msra.mxu0 0.0
        %808 = vmatprep.subr.mxu0 0.0
        %809 = vmatpush1.msra.mxu0 0.0
        %810 = vmatprep.subr.mxu0 0.0
        %811 = vmatpush1.msra.mxu0 0.0
        %812 = vmatprep.subr.mxu0 0.0
        %813 = vmatpush1.msra.mxu0 0.0
        %814 = vmatprep.subr.mxu0 0.0
        %815 = vmatpush1.msra.mxu0 0.0
        %816 = vmatprep.subr.mxu0 0.0
        %817 = vmatpush1.msra.mxu0 0.0
        %818 = vmatprep.subr.mxu0 0.0
        %819 = vmatpush1.msra.mxu0 0.0
        %820 = vmatprep.subr.mxu0 0.0
        %821 = vmatpush1.msra.mxu0 0.0
        %822 = vmatprep.subr.mxu0 0.0
        %823 = vmatpush1.msra.mxu0 0.0
        %824 = vmatprep.subr.mxu0 0.0
        %825 = vmatpush1.msra.mxu0 0.0
        %826 = vmatprep.subr.mxu0 0.0
        %827 = vmatpush1.msra.mxu0 0.0
        %828 = vmatprep.subr.mxu0 0.0
        %829 = vmatpush1.msra.mxu0 0.0
        %830 = vmatprep.subr.mxu0 0.0
        %831 = vmatpush1.msra.mxu0 0.0
        %832 = vmatprep.subr.mxu0 0.0
        %833 = vmatpush1.msra.mxu0 %v800
        %834 = vmatprep.subr.mxu0 0.0
        %835 = vmatpush2.msra.mxu0 0.0
        %836 = vmatprep.subr.mxu0 0.0
        %837 = vmatpush2.msra.mxu0 0.0
        %838 = vmatprep.subr.mxu0 0.0
        %839 = vmatpush2.msra.mxu0 0.0
        %840 = vmatprep.subr.mxu0 0.0
        %841 = vmatpush2.msra.mxu0 0.0
        %842 = vmatprep.subr.mxu0 0.0
        %843 = vmatpush2.msra.mxu0 0.0
        %844 = vmatprep.subr.mxu0 0.0
        %845 = vmatpush2.msra.mxu0 0.0
        %846 = vmatprep.subr.mxu0 0.0
        %847 = vmatpush2.msra.mxu0 0.0
        %848 = vmatprep.subr.mxu0 0.0
        %849 = vmatpush2.msra.mxu0 0.0
        %850 = vmatprep.subr.mxu0 0.0
        %851 = vmatpush2.msra.mxu0 0.0
        %852 = vmatprep.subr.mxu0 0.0
        %853 = vmatpush2.msra.mxu0 0.0
        %854 = vmatprep.subr.mxu0 0.0
        %855 = vmatpush2.msra.mxu0 0.0
        %856 = vmatprep.subr.mxu0 0.0
        %857 = vmatpush2.msra.mxu0 0.0
        %858 = vmatprep.subr.mxu0 0.0
        %859 = vmatpush2.msra.mxu0 0.0
        %860 = vmatprep.subr.mxu0 0.0
        %861 = vmatpush2.msra.mxu0 0.0
        %862 = vmatprep.subr.mxu0 0.0
        %863 = vmatpush2.msra.mxu0 0.0
        %864 = vmatprep.subr.mxu0 0.0
        %865 = vmatpush2.msra.mxu0 0.0
        %866 = vmatprep.mubr.f32.mxu0 0.0
        %867 = vmatmul.mubr.f32.gmra.mxu0 %v775
        %v868 = vpop.f32.mrf.mxu0
        %v869 = vadd.f32 0.0, %v868
        %v870 = vpop.f32.mrf.mxu0
        %871 = vmatprep.mubr.f32.mxu0 0.0
        %872 = vmatmul.mubr.f32.gmra.mxu0 %v778
        %v873 = vpop.f32.mrf.mxu0
        %v874 = vadd.f32 0.0, %v873
        %v875 = vpop.f32.mrf.mxu0
        %876 = vmatprep.mubr.f32.mxu0 0.0
        %877 = vmatmul.mubr.f32.gmra.mxu0 %v781
        %v878 = vpop.f32.mrf.mxu0
        %v879 = vadd.f32 0.0, %v878
        %v880 = vpop.f32.mrf.mxu0
        %881 = vmatprep.mubr.f32.mxu0 0.0
        %882 = vmatmul.mubr.f32.gmra.mxu0 %v784
        %v883 = vpop.f32.mrf.mxu0
        %v884 = vadd.f32 0.0, %v883
        %v885 = vpop.f32.mrf.mxu0
        %886 = vmatprep.mubr.f32.mxu0 0.0
        %887 = vmatmul.mubr.f32.gmra.mxu0 %v787
        %v888 = vpop.f32.mrf.mxu0
        %v889 = vadd.f32 0.0, %v888
        %v890 = vpop.f32.mrf.mxu0
        %891 = vmatprep.mubr.f32.mxu0 0.0
        %892 = vmatmul.mubr.f32.gmra.mxu0 %v790
        %v893 = vpop.f32.mrf.mxu0
        %v894 = vadd.f32 0.0, %v893
        %v895 = vpop.f32.mrf.mxu0
        %896 = vmatprep.mubr.f32.mxu0 0.0
        %897 = vmatmul.mubr.f32.gmra.mxu0 %v793
        %v898 = vpop.f32.mrf.mxu0
        %v899 = vadd.f32 0.0, %v898
        %v900 = vpop.f32.mrf.mxu0
        %901 = vmatprep.mubr.f32.mxu0 0.0
        %902 = vmatmul.mubr.f32.gmra.mxu0 %v796
        %v903 = vpop.f32.mrf.mxu0
        %v904 = vadd.f32 0.0, %v903
        %v905 = vpop.f32.mrf.mxu0
        %906 = vdwg.mxu0
        %v907 = vmul.f32 %v608, %v869
        %v908 = vmul.f32 %v610, %v874
        %v909 = vmul.f32 %v612, %v879
        %v910 = vmul.f32 %v614, %v884
        %v911 = vmul.f32 %v616, %v889
        %v912 = vmul.f32 %v618, %v894
        %v913 = vmul.f32 %v620, %v899
        %v914 = vmul.f32 %v622, %v904
        %v915 = vld [vmem:[%s6] sm:$0xff]
        %v916 = vld [vmem:[%s6 + $0x8] sm:$0xff]
        %v917 = vld [vmem:[%s6 + $0x10] sm:$0xff]
        %v918 = vld [vmem:[%s6 + $0x18] sm:$0xff]
        %v920 = vsel %vm406, %v907, 0
        %v923 = vsel %vm406, %v908, 0
        %v926 = vsel %vm406, %v909, 0
        %v929 = vsel %vm406, %v910, 0
        %v932 = vsel %vm406, %v911, 0
        %v935 = vsel %vm406, %v912, 0
        %v938 = vsel %vm406, %v913, 0
        %v941 = vsel %vm406, %v914, 0
        %943 = vmatprep.subr.mxu0 0.0
        %944 = vmatpush1.msra.mxu0 0.0
        %945 = vmatprep.subr.mxu0 0.0
        %946 = vmatpush1.msra.mxu0 0.0
        %947 = vmatprep.subr.mxu0 0.0
        %948 = vmatpush1.msra.mxu0 0.0
        %949 = vmatprep.subr.mxu0 0.0
        %950 = vmatpush1.msra.mxu0 0.0
        %951 = vmatprep.subr.mxu0 0.0
        %952 = vmatpush1.msra.mxu0 0.0
        %953 = vmatprep.subr.mxu0 0.0
        %954 = vmatpush1.msra.mxu0 0.0
        %955 = vmatprep.subr.mxu0 0.0
        %956 = vmatpush1.msra.mxu0 0.0
        %957 = vmatprep.subr.mxu0 0.0
        %958 = vmatpush1.msra.mxu0 0.0
        %959 = vmatprep.subr.mxu0 0.0
        %960 = vmatpush1.msra.mxu0 0.0
        %961 = vmatprep.subr.mxu0 0.0
        %962 = vmatpush1.msra.mxu0 0.0
        %963 = vmatprep.subr.mxu0 0.0
        %964 = vmatpush1.msra.mxu0 0.0
        %965 = vmatprep.subr.mxu0 0.0
        %966 = vmatpush1.msra.mxu0 0.0
        %967 = vmatprep.subr.mxu0 0.0
        %968 = vmatpush1.msra.mxu0 %v918
        %969 = vmatprep.subr.mxu0 0.0
        %970 = vmatpush1.msra.mxu0 %v917
        %971 = vmatprep.subr.mxu0 0.0
        %972 = vmatpush1.msra.mxu0 %v916
        %973 = vmatprep.subr.mxu0 0.0
        %974 = vmatpush1.msra.mxu0 %v915
        %975 = vmatprep.subr.mxu0 0.0
        %976 = vmatpush2.msra.mxu0 0.0
        %977 = vmatprep.subr.mxu0 0.0
        %978 = vmatpush2.msra.mxu0 0.0
        %979 = vmatprep.subr.mxu0 0.0
        %980 = vmatpush2.msra.mxu0 0.0
        %981 = vmatprep.subr.mxu0 0.0
        %982 = vmatpush2.msra.mxu0 0.0
        %983 = vmatprep.subr.mxu0 0.0
        %984 = vmatpush2.msra.mxu0 0.0
        %985 = vmatprep.subr.mxu0 0.0
        %986 = vmatpush2.msra.mxu0 0.0
        %987 = vmatprep.subr.mxu0 0.0
        %988 = vmatpush2.msra.mxu0 0.0
        %989 = vmatprep.subr.mxu0 0.0
        %990 = vmatpush2.msra.mxu0 0.0
        %991 = vmatprep.subr.mxu0 0.0
        %992 = vmatpush2.msra.mxu0 0.0
        %993 = vmatprep.subr.mxu0 0.0
        %994 = vmatpush2.msra.mxu0 0.0
        %995 = vmatprep.subr.mxu0 0.0
        %996 = vmatpush2.msra.mxu0 0.0
        %997 = vmatprep.subr.mxu0 0.0
        %998 = vmatpush2.msra.mxu0 0.0
        %999 = vmatprep.subr.mxu0 0.0
        %1000 = vmatpush2.msra.mxu0 0.0
        %1001 = vmatprep.subr.mxu0 0.0
        %1002 = vmatpush2.msra.mxu0 0.0
        %1003 = vmatprep.subr.mxu0 0.0
        %1004 = vmatpush2.msra.mxu0 0.0
        %1005 = vmatprep.subr.mxu0 0.0
        %1006 = vmatpush2.msra.mxu0 0.0
        %1007 = vmatprep.mubr.f32.mxu0 0.0
        %1008 = vmatmul.mubr.f32.gmra.mxu0 %v920
        %v1009 = vpop.f32.mrf.mxu0
        %v1010 = vadd.f32 0.0, %v1009
        %v1011 = vpop.f32.mrf.mxu0
        %1012 = vmatprep.mubr.f32.mxu0 0.0
        %1013 = vmatmul.mubr.f32.gmra.mxu0 %v923
        %v1014 = vpop.f32.mrf.mxu0
        %v1015 = vadd.f32 0.0, %v1014
        %v1016 = vpop.f32.mrf.mxu0
        %1017 = vmatprep.mubr.f32.mxu0 0.0
        %1018 = vmatmul.mubr.f32.gmra.mxu0 %v926
        %v1019 = vpop.f32.mrf.mxu0
        %v1020 = vadd.f32 0.0, %v1019
        %v1021 = vpop.f32.mrf.mxu0
        %1022 = vmatprep.mubr.f32.mxu0 0.0
        %1023 = vmatmul.mubr.f32.gmra.mxu0 %v929
        %v1024 = vpop.f32.mrf.mxu0
        %v1025 = vadd.f32 0.0, %v1024
        %v1026 = vpop.f32.mrf.mxu0
        %1027 = vmatprep.mubr.f32.mxu0 0.0
        %1028 = vmatmul.mubr.f32.gmra.mxu0 %v932
        %v1029 = vpop.f32.mrf.mxu0
        %v1030 = vadd.f32 0.0, %v1029
        %v1031 = vpop.f32.mrf.mxu0
        %1032 = vmatprep.mubr.f32.mxu0 0.0
        %1033 = vmatmul.mubr.f32.gmra.mxu0 %v935
        %v1034 = vpop.f32.mrf.mxu0
        %v1035 = vadd.f32 0.0, %v1034
        %v1036 = vpop.f32.mrf.mxu0
        %1037 = vmatprep.mubr.f32.mxu0 0.0
        %1038 = vmatmul.mubr.f32.gmra.mxu0 %v938
        %v1039 = vpop.f32.mrf.mxu0
        %v1040 = vadd.f32 0.0, %v1039
        %v1041 = vpop.f32.mrf.mxu0
        %1042 = vmatprep.mubr.f32.mxu0 0.0
        %1043 = vmatmul.mubr.f32.gmra.mxu0 %v941
        %v1044 = vpop.f32.mrf.mxu0
        %v1045 = vadd.f32 0.0, %v1044
        %v1046 = vpop.f32.mrf.mxu0
        %1047 = vdwg.mxu0
        %vm1048 = vcmask 64512
        %v1049 = vsel %vm1048, %v1010, -inf
        %1050 = vmax.xlane.f32.xlu0 %v1049
        %v1051 = vpop.xlane.xlu0 %1050
        %v1052 = vsel %vm1048, %v1015, -inf
        %1053 = vmax.xlane.f32.xlu0 %v1052
        %v1054 = vpop.xlane.xlu0 %1053
        %v1055 = vsel %vm1048, %v1020, -inf
        %1056 = vmax.xlane.f32.xlu0 %v1055
        %v1057 = vpop.xlane.xlu0 %1056
        %v1058 = vsel %vm1048, %v1025, -inf
        %1059 = vmax.xlane.f32.xlu0 %v1058
        %v1060 = vpop.xlane.xlu0 %1059
        %v1061 = vsel %vm1048, %v1030, -inf
        %1062 = vmax.xlane.f32.xlu0 %v1061
        %v1063 = vpop.xlane.xlu0 %1062
        %v1064 = vsel %vm1048, %v1035, -inf
        %1065 = vmax.xlane.f32.xlu0 %v1064
        %v1066 = vpop.xlane.xlu0 %1065
        %v1067 = vsel %vm1048, %v1040, -inf
        %1068 = vmax.xlane.f32.xlu0 %v1067
        %v1069 = vpop.xlane.xlu0 %1068
        %v1070 = vsel %vm1048, %v1045, -inf
        %1071 = vmax.xlane.f32.xlu0 %v1070
        %v1072 = vpop.xlane.xlu0 %1071
        %v1073 = vsub.f32 %v1010, %v1051
        %v1074 = vsub.f32 %v1015, %v1054
        %v1075 = vsub.f32 %v1020, %v1057
        %v1076 = vsub.f32 %v1025, %v1060
        %v1077 = vsub.f32 %v1030, %v1063
        %v1078 = vsub.f32 %v1035, %v1066
        %v1079 = vsub.f32 %v1040, %v1069
        %v1080 = vsub.f32 %v1045, %v1072
        %v1081 = vmul.f32 %v1073, 1.442695
        %v1082 = vpow.pop %v1081
        %v1083 = vmul.f32 %v1074, 1.442695
        %v1084 = vpow.pop %v1083
        %v1085 = vmul.f32 %v1075, 1.442695
        %v1086 = vpow.pop %v1085
        %v1087 = vmul.f32 %v1076, 1.442695
        %v1088 = vpow.pop %v1087
        %v1089 = vmul.f32 %v1077, 1.442695
        %v1090 = vpow.pop %v1089
        %v1091 = vmul.f32 %v1078, 1.442695
        %v1092 = vpow.pop %v1091
        %v1093 = vmul.f32 %v1079, 1.442695
        %v1094 = vpow.pop %v1093
        %v1095 = vmul.f32 %v1080, 1.442695
        %v1096 = vpow.pop %v1095
        %v1097 = vsel %vm1048, %v1082, 0.0
        %1098 = vadd.xlane.f32.xlu0 %v1097
        %v1099 = vpop.xlane.xlu0 %1098
        %v1100 = vsel %vm1048, %v1084, 0.0
        %1101 = vadd.xlane.f32.xlu0 %v1100
        %v1102 = vpop.xlane.xlu0 %1101
        %v1103 = vsel %vm1048, %v1086, 0.0
        %1104 = vadd.xlane.f32.xlu0 %v1103
        %v1105 = vpop.xlane.xlu0 %1104
        %v1106 = vsel %vm1048, %v1088, 0.0
        %1107 = vadd.xlane.f32.xlu0 %v1106
        %v1108 = vpop.xlane.xlu0 %1107
        %v1109 = vsel %vm1048, %v1090, 0.0
        %1110 = vadd.xlane.f32.xlu0 %v1109
        %v1111 = vpop.xlane.xlu0 %1110
        %v1112 = vsel %vm1048, %v1092, 0.0
        %1113 = vadd.xlane.f32.xlu0 %v1112
        %v1114 = vpop.xlane.xlu0 %1113
        %v1115 = vsel %vm1048, %v1094, 0.0
        %1116 = vadd.xlane.f32.xlu0 %v1115
        %v1117 = vpop.xlane.xlu0 %1116
        %v1118 = vsel %vm1048, %v1096, 0.0
        %1119 = vadd.xlane.f32.xlu0 %v1118
        %v1120 = vpop.xlane.xlu0 %1119
        %v1121 = vrcp.pop %v1099
        %v1122 = vmul.f32 %v1082, %v1121
        %v1123 = vrcp.pop %v1102
        %v1124 = vmul.f32 %v1084, %v1123
        %v1125 = vrcp.pop %v1105
        %v1126 = vmul.f32 %v1086, %v1125
        %v1127 = vrcp.pop %v1108
        %v1128 = vmul.f32 %v1088, %v1127
        %v1129 = vrcp.pop %v1111
        %v1130 = vmul.f32 %v1090, %v1129
        %v1131 = vrcp.pop %v1114
        %v1132 = vmul.f32 %v1092, %v1131
        %v1133 = vrcp.pop %v1117
        %v1134 = vmul.f32 %v1094, %v1133
        %v1135 = vrcp.pop %v1120
        %v1136 = vmul.f32 %v1096, %v1135
        %1138 = vset.pattern.permute.xlu0 0
        %1139 = vperm.xlu0 %1138, %v386
        %v1140 = vpop.permute.xlu0 %1139
        %1143 = vset.pattern.permute.xlu0 0
        %1144 = vperm.xlu0 %1143, %v387
        %v1145 = vpop.permute.xlu0 %1144
        %1148 = vset.pattern.permute.xlu0 0
        %1149 = vperm.xlu0 %1148, %v388
        %v1150 = vpop.permute.xlu0 %1149
        %1153 = vset.pattern.permute.xlu0 0
        %1154 = vperm.xlu0 %1153, %v389
        %v1155 = vpop.permute.xlu0 %1154
        %1158 = vset.pattern.permute.xlu0 0
        %1159 = vperm.xlu0 %1158, %v390
        %v1160 = vpop.permute.xlu0 %1159
        %1163 = vset.pattern.permute.xlu0 0
        %1164 = vperm.xlu0 %1163, %v391
        %v1165 = vpop.permute.xlu0 %1164
        %1168 = vset.pattern.permute.xlu0 0
        %1169 = vperm.xlu0 %1168, %v392
        %v1170 = vpop.permute.xlu0 %1169
        %1173 = vset.pattern.permute.xlu0 0
        %1174 = vperm.xlu0 %1173, %v393
        %v1175 = vpop.permute.xlu0 %1174
        %v1177 = vmul.f32 %v1122, %v1140
        %v1178 = vmul.f32 %v1124, %v1145
        %v1179 = vmul.f32 %v1126, %v1150
        %v1180 = vmul.f32 %v1128, %v1155
        %v1181 = vmul.f32 %v1130, %v1160
        %v1182 = vmul.f32 %v1132, %v1165
        %v1183 = vmul.f32 %v1134, %v1170
        %v1184 = vmul.f32 %v1136, %v1175
        %1185 = vst.msk [vmem:[%s376] sm:$0xff] %vm1048, %v1177
        %1186 = vst.msk [vmem:[%s376 + $0x8] sm:$0xff] %vm1048, %v1178
        %1187 = vst.msk [vmem:[%s376 + $0x10] sm:$0xff] %vm1048, %v1179
        %1188 = vst.msk [vmem:[%s376 + $0x18] sm:$0xff] %vm1048, %v1180
        %1189 = vst.msk [vmem:[%s376 + $0x20] sm:$0xff] %vm1048, %v1181
        %1190 = vst.msk [vmem:[%s376 + $0x28] sm:$0xff] %vm1048, %v1182
        %1191 = vst.msk [vmem:[%s376 + $0x30] sm:$0xff] %vm1048, %v1183
        %1192 = vst.msk [vmem:[%s376 + $0x38] sm:$0xff] %vm1048, %v1184
        %1193 = vxpose.xlu0.b32.start [1/16] %v1177, 128
        %1194 = vxpose.xlu0.b32.cont [2/16] %v1178, 128
        %1195 = vxpose.xlu0.b32.cont [3/16] 0.0, 128
        %1196 = vxpose.xlu0.b32.cont [4/16] 0.0, 128
        %1197 = vxpose.xlu0.b32.cont [5/16] 0.0, 128
        %1198 = vxpose.xlu0.b32.cont [6/16] 0.0, 128
        %1199 = vxpose.xlu0.b32.cont [7/16] 0.0, 128
        %1200 = vxpose.xlu0.b32.cont [8/16] 0.0, 128
        %1201 = vxpose.xlu0.b32.cont [9/16] 0.0, 128
        %1202 = vxpose.xlu0.b32.cont [10/16] 0.0, 128
        %1203 = vxpose.xlu0.b32.cont [11/16] 0.0, 128
        %1204 = vxpose.xlu0.b32.cont [12/16] 0.0, 128
        %1205 = vxpose.xlu0.b32.cont [13/16] 0.0, 128
        %1206 = vxpose.xlu0.b32.cont [14/16] 0.0, 128
        %1207 = vxpose.xlu0.b32.cont [15/16] 0.0, 128
        %1208 = vxpose.xlu0.b32.end [16/16] 0.0, 128
        %v1209 = vpop.trf.xlu0
        %v1210 = vpop.trf.xlu0
        %v1211 = vpop.trf.xlu0
        %v1212 = vpop.trf.xlu0
        %v1213 = vpop.trf.xlu0
        %v1214 = vpop.trf.xlu0
        %v1215 = vpop.trf.xlu0
        %v1216 = vpop.trf.xlu0
        %v1217 = vpop.trf.xlu0
        %v1218 = vpop.trf.xlu0
        %v1219 = vpop.trf.xlu0
        %v1220 = vpop.trf.xlu0
        %v1221 = vpop.trf.xlu0
        %v1222 = vpop.trf.xlu0
        %v1223 = vpop.trf.xlu0
        %v1224 = vpop.trf.xlu0
        %vm1225 = vcmask 130048
        %v1227 = vsel %vm1225, %v1209, 0
        %1229 = vmatprep.subr.mxu0 0.0
        %1230 = vmatpush1.msra.mxu0 0.0
        %1231 = vmatprep.subr.mxu0 0.0
        %1232 = vmatpush1.msra.mxu0 0.0
        %1233 = vmatprep.subr.mxu0 0.0
        %1234 = vmatpush1.msra.mxu0 0.0
        %1235 = vmatprep.subr.mxu0 0.0
        %1236 = vmatpush1.msra.mxu0 0.0
        %1237 = vmatprep.subr.mxu0 0.0
        %1238 = vmatpush1.msra.mxu0 0.0
        %1239 = vmatprep.subr.mxu0 0.0
        %1240 = vmatpush1.msra.mxu0 0.0
        %1241 = vmatprep.subr.mxu0 0.0
        %1242 = vmatpush1.msra.mxu0 0.0
        %1243 = vmatprep.subr.mxu0 0.0
        %1244 = vmatpush1.msra.mxu0 0.0
        %1245 = vmatprep.subr.mxu0 0.0
        %1246 = vmatpush1.msra.mxu0 0.0
        %1247 = vmatprep.subr.mxu0 0.0
        %1248 = vmatpush1.msra.mxu0 0.0
        %1249 = vmatprep.subr.mxu0 0.0
        %1250 = vmatpush1.msra.mxu0 0.0
        %1251 = vmatprep.subr.mxu0 0.0
        %1252 = vmatpush1.msra.mxu0 0.0
        %1253 = vmatprep.subr.mxu0 0.0
        %1254 = vmatpush1.msra.mxu0 0.0
        %1255 = vmatprep.subr.mxu0 0.0
        %1256 = vmatpush1.msra.mxu0 0.0
        %1257 = vmatprep.subr.mxu0 0.0
        %1258 = vmatpush1.msra.mxu0 %v379
        %1259 = vmatprep.subr.mxu0 0.0
        %1260 = vmatpush1.msra.mxu0 %v378
        %1261 = vmatprep.subr.mxu0 0.0
        %1262 = vmatpush2.msra.mxu0 0.0
        %1263 = vmatprep.subr.mxu0 0.0
        %1264 = vmatpush2.msra.mxu0 0.0
        %1265 = vmatprep.subr.mxu0 0.0
        %1266 = vmatpush2.msra.mxu0 0.0
        %1267 = vmatprep.subr.mxu0 0.0
        %1268 = vmatpush2.msra.mxu0 0.0
        %1269 = vmatprep.subr.mxu0 0.0
        %1270 = vmatpush2.msra.mxu0 0.0
        %1271 = vmatprep.subr.mxu0 0.0
        %1272 = vmatpush2.msra.mxu0 0.0
        %1273 = vmatprep.subr.mxu0 0.0
        %1274 = vmatpush2.msra.mxu0 0.0
        %1275 = vmatprep.subr.mxu0 0.0
        %1276 = vmatpush2.msra.mxu0 0.0
        %1277 = vmatprep.subr.mxu0 0.0
        %1278 = vmatpush2.msra.mxu0 0.0
        %1279 = vmatprep.subr.mxu0 0.0
        %1280 = vmatpush2.msra.mxu0 0.0
        %1281 = vmatprep.subr.mxu0 0.0
        %1282 = vmatpush2.msra.mxu0 0.0
        %1283 = vmatprep.subr.mxu0 0.0
        %1284 = vmatpush2.msra.mxu0 0.0
        %1285 = vmatprep.subr.mxu0 0.0
        %1286 = vmatpush2.msra.mxu0 0.0
        %1287 = vmatprep.subr.mxu0 0.0
        %1288 = vmatpush2.msra.mxu0 0.0
        %1289 = vmatprep.subr.mxu0 0.0
        %1290 = vmatpush2.msra.mxu0 0.0
        %1291 = vmatprep.subr.mxu0 0.0
        %1292 = vmatpush2.msra.mxu0 0.0
        %1293 = vmatprep.mubr.f32.mxu0 0.0
        %1294 = vmatmul.mubr.f32.gmra.mxu0 %v1227
        %v1295 = vpop.f32.mrf.mxu0
        %v1296 = vadd.f32 0.0, %v1295
        %v1297 = vpop.f32.mrf.mxu0
        %1298 = vdwg.mxu0
        %1299 = vxpose.xlu0.b32.start [1/16] %v1179, 128
        %1300 = vxpose.xlu0.b32.cont [2/16] %v1180, 128
        %1301 = vxpose.xlu0.b32.cont [3/16] 0.0, 128
        %1302 = vxpose.xlu0.b32.cont [4/16] 0.0, 128
        %1303 = vxpose.xlu0.b32.cont [5/16] 0.0, 128
        %1304 = vxpose.xlu0.b32.cont [6/16] 0.0, 128
        %1305 = vxpose.xlu0.b32.cont [7/16] 0.0, 128
        %1306 = vxpose.xlu0.b32.cont [8/16] 0.0, 128
        %1307 = vxpose.xlu0.b32.cont [9/16] 0.0, 128
        %1308 = vxpose.xlu0.b32.cont [10/16] 0.0, 128
        %1309 = vxpose.xlu0.b32.cont [11/16] 0.0, 128
        %1310 = vxpose.xlu0.b32.cont [12/16] 0.0, 128
        %1311 = vxpose.xlu0.b32.cont [13/16] 0.0, 128
        %1312 = vxpose.xlu0.b32.cont [14/16] 0.0, 128
        %1313 = vxpose.xlu0.b32.cont [15/16] 0.0, 128
        %1314 = vxpose.xlu0.b32.end [16/16] 0.0, 128
        %v1315 = vpop.trf.xlu0
        %v1316 = vpop.trf.xlu0
        %v1317 = vpop.trf.xlu0
        %v1318 = vpop.trf.xlu0
        %v1319 = vpop.trf.xlu0
        %v1320 = vpop.trf.xlu0
        %v1321 = vpop.trf.xlu0
        %v1322 = vpop.trf.xlu0
        %v1323 = vpop.trf.xlu0
        %v1324 = vpop.trf.xlu0
        %v1325 = vpop.trf.xlu0
        %v1326 = vpop.trf.xlu0
        %v1327 = vpop.trf.xlu0
        %v1328 = vpop.trf.xlu0
        %v1329 = vpop.trf.xlu0
        %v1330 = vpop.trf.xlu0
        %v1332 = vsel %vm1225, %v1315, 0
        %1334 = vmatprep.subr.mxu0 0.0
        %1335 = vmatpush1.msra.mxu0 0.0
        %1336 = vmatprep.subr.mxu0 0.0
        %1337 = vmatpush1.msra.mxu0 0.0
        %1338 = vmatprep.subr.mxu0 0.0
        %1339 = vmatpush1.msra.mxu0 0.0
        %1340 = vmatprep.subr.mxu0 0.0
        %1341 = vmatpush1.msra.mxu0 0.0
        %1342 = vmatprep.subr.mxu0 0.0
        %1343 = vmatpush1.msra.mxu0 0.0
        %1344 = vmatprep.subr.mxu0 0.0
        %1345 = vmatpush1.msra.mxu0 0.0
        %1346 = vmatprep.subr.mxu0 0.0
        %1347 = vmatpush1.msra.mxu0 0.0
        %1348 = vmatprep.subr.mxu0 0.0
        %1349 = vmatpush1.msra.mxu0 0.0
        %1350 = vmatprep.subr.mxu0 0.0
        %1351 = vmatpush1.msra.mxu0 0.0
        %1352 = vmatprep.subr.mxu0 0.0
        %1353 = vmatpush1.msra.mxu0 0.0
        %1354 = vmatprep.subr.mxu0 0.0
        %1355 = vmatpush1.msra.mxu0 0.0
        %1356 = vmatprep.subr.mxu0 0.0
        %1357 = vmatpush1.msra.mxu0 0.0
        %1358 = vmatprep.subr.mxu0 0.0
        %1359 = vmatpush1.msra.mxu0 0.0
        %1360 = vmatprep.subr.mxu0 0.0
        %1361 = vmatpush1.msra.mxu0 0.0
        %1362 = vmatprep.subr.mxu0 0.0
        %1363 = vmatpush1.msra.mxu0 %v381
        %1364 = vmatprep.subr.mxu0 0.0
        %1365 = vmatpush1.msra.mxu0 %v380
        %1366 = vmatprep.subr.mxu0 0.0
        %1367 = vmatpush2.msra.mxu0 0.0
        %1368 = vmatprep.subr.mxu0 0.0
        %1369 = vmatpush2.msra.mxu0 0.0
        %1370 = vmatprep.subr.mxu0 0.0
        %1371 = vmatpush2.msra.mxu0 0.0
        %1372 = vmatprep.subr.mxu0 0.0
        %1373 = vmatpush2.msra.mxu0 0.0
        %1374 = vmatprep.subr.mxu0 0.0
        %1375 = vmatpush2.msra.mxu0 0.0
        %1376 = vmatprep.subr.mxu0 0.0
        %1377 = vmatpush2.msra.mxu0 0.0
        %1378 = vmatprep.subr.mxu0 0.0
        %1379 = vmatpush2.msra.mxu0 0.0
        %1380 = vmatprep.subr.mxu0 0.0
        %1381 = vmatpush2.msra.mxu0 0.0
        %1382 = vmatprep.subr.mxu0 0.0
        %1383 = vmatpush2.msra.mxu0 0.0
        %1384 = vmatprep.subr.mxu0 0.0
        %1385 = vmatpush2.msra.mxu0 0.0
        %1386 = vmatprep.subr.mxu0 0.0
        %1387 = vmatpush2.msra.mxu0 0.0
        %1388 = vmatprep.subr.mxu0 0.0
        %1389 = vmatpush2.msra.mxu0 0.0
        %1390 = vmatprep.subr.mxu0 0.0
        %1391 = vmatpush2.msra.mxu0 0.0
        %1392 = vmatprep.subr.mxu0 0.0
        %1393 = vmatpush2.msra.mxu0 0.0
        %1394 = vmatprep.subr.mxu0 0.0
        %1395 = vmatpush2.msra.mxu0 0.0
        %1396 = vmatprep.subr.mxu0 0.0
        %1397 = vmatpush2.msra.mxu0 0.0
        %1398 = vmatprep.mubr.f32.mxu0 0.0
        %1399 = vmatmul.mubr.f32.gmra.mxu0 %v1332
        %v1400 = vpop.f32.mrf.mxu0
        %v1401 = vadd.f32 0.0, %v1400
        %v1402 = vpop.f32.mrf.mxu0
        %1403 = vdwg.mxu0
        %1404 = vxpose.xlu0.b32.start [1/16] %v1181, 128
        %1405 = vxpose.xlu0.b32.cont [2/16] %v1182, 128
        %1406 = vxpose.xlu0.b32.cont [3/16] 0.0, 128
        %1407 = vxpose.xlu0.b32.cont [4/16] 0.0, 128
        %1408 = vxpose.xlu0.b32.cont [5/16] 0.0, 128
        %1409 = vxpose.xlu0.b32.cont [6/16] 0.0, 128
        %1410 = vxpose.xlu0.b32.cont [7/16] 0.0, 128
        %1411 = vxpose.xlu0.b32.cont [8/16] 0.0, 128
        %1412 = vxpose.xlu0.b32.cont [9/16] 0.0, 128
        %1413 = vxpose.xlu0.b32.cont [10/16] 0.0, 128
        %1414 = vxpose.xlu0.b32.cont [11/16] 0.0, 128
        %1415 = vxpose.xlu0.b32.cont [12/16] 0.0, 128
        %1416 = vxpose.xlu0.b32.cont [13/16] 0.0, 128
        %1417 = vxpose.xlu0.b32.cont [14/16] 0.0, 128
        %1418 = vxpose.xlu0.b32.cont [15/16] 0.0, 128
        %1419 = vxpose.xlu0.b32.end [16/16] 0.0, 128
        %v1420 = vpop.trf.xlu0
        %v1421 = vpop.trf.xlu0
        %v1422 = vpop.trf.xlu0
        %v1423 = vpop.trf.xlu0
        %v1424 = vpop.trf.xlu0
        %v1425 = vpop.trf.xlu0
        %v1426 = vpop.trf.xlu0
        %v1427 = vpop.trf.xlu0
        %v1428 = vpop.trf.xlu0
        %v1429 = vpop.trf.xlu0
        %v1430 = vpop.trf.xlu0
        %v1431 = vpop.trf.xlu0
        %v1432 = vpop.trf.xlu0
        %v1433 = vpop.trf.xlu0
        %v1434 = vpop.trf.xlu0
        %v1435 = vpop.trf.xlu0
        %v1437 = vsel %vm1225, %v1420, 0
        %1439 = vmatprep.subr.mxu0 0.0
        %1440 = vmatpush1.msra.mxu0 0.0
        %1441 = vmatprep.subr.mxu0 0.0
        %1442 = vmatpush1.msra.mxu0 0.0
        %1443 = vmatprep.subr.mxu0 0.0
        %1444 = vmatpush1.msra.mxu0 0.0
        %1445 = vmatprep.subr.mxu0 0.0
        %1446 = vmatpush1.msra.mxu0 0.0
        %1447 = vmatprep.subr.mxu0 0.0
        %1448 = vmatpush1.msra.mxu0 0.0
        %1449 = vmatprep.subr.mxu0 0.0
        %1450 = vmatpush1.msra.mxu0 0.0
        %1451 = vmatprep.subr.mxu0 0.0
        %1452 = vmatpush1.msra.mxu0 0.0
        %1453 = vmatprep.subr.mxu0 0.0
        %1454 = vmatpush1.msra.mxu0 0.0
        %1455 = vmatprep.subr.mxu0 0.0
        %1456 = vmatpush1.msra.mxu0 0.0
        %1457 = vmatprep.subr.mxu0 0.0
        %1458 = vmatpush1.msra.mxu0 0.0
        %1459 = vmatprep.subr.mxu0 0.0
        %1460 = vmatpush1.msra.mxu0 0.0
        %1461 = vmatprep.subr.mxu0 0.0
        %1462 = vmatpush1.msra.mxu0 0.0
        %1463 = vmatprep.subr.mxu0 0.0
        %1464 = vmatpush1.msra.mxu0 0.0
        %1465 = vmatprep.subr.mxu0 0.0
        %1466 = vmatpush1.msra.mxu0 0.0
        %1467 = vmatprep.subr.mxu0 0.0
        %1468 = vmatpush1.msra.mxu0 %v383
        %1469 = vmatprep.subr.mxu0 0.0
        %1470 = vmatpush1.msra.mxu0 %v382
        %1471 = vmatprep.subr.mxu0 0.0
        %1472 = vmatpush2.msra.mxu0 0.0
        %1473 = vmatprep.subr.mxu0 0.0
        %1474 = vmatpush2.msra.mxu0 0.0
        %1475 = vmatprep.subr.mxu0 0.0
        %1476 = vmatpush2.msra.mxu0 0.0
        %1477 = vmatprep.subr.mxu0 0.0
        %1478 = vmatpush2.msra.mxu0 0.0
        %1479 = vmatprep.subr.mxu0 0.0
        %1480 = vmatpush2.msra.mxu0 0.0
        %1481 = vmatprep.subr.mxu0 0.0
        %1482 = vmatpush2.msra.mxu0 0.0
        %1483 = vmatprep.subr.mxu0 0.0
        %1484 = vmatpush2.msra.mxu0 0.0
        %1485 = vmatprep.subr.mxu0 0.0
        %1486 = vmatpush2.msra.mxu0 0.0
        %1487 = vmatprep.subr.mxu0 0.0
        %1488 = vmatpush2.msra.mxu0 0.0
        %1489 = vmatprep.subr.mxu0 0.0
        %1490 = vmatpush2.msra.mxu0 0.0
        %1491 = vmatprep.subr.mxu0 0.0
        %1492 = vmatpush2.msra.mxu0 0.0
        %1493 = vmatprep.subr.mxu0 0.0
        %1494 = vmatpush2.msra.mxu0 0.0
        %1495 = vmatprep.subr.mxu0 0.0
        %1496 = vmatpush2.msra.mxu0 0.0
        %1497 = vmatprep.subr.mxu0 0.0
        %1498 = vmatpush2.msra.mxu0 0.0
        %1499 = vmatprep.subr.mxu0 0.0
        %1500 = vmatpush2.msra.mxu0 0.0
        %1501 = vmatprep.subr.mxu0 0.0
        %1502 = vmatpush2.msra.mxu0 0.0
        %1503 = vmatprep.mubr.f32.mxu0 0.0
        %1504 = vmatmul.mubr.f32.gmra.mxu0 %v1437
        %v1505 = vpop.f32.mrf.mxu0
        %v1506 = vadd.f32 0.0, %v1505
        %v1507 = vpop.f32.mrf.mxu0
        %1508 = vdwg.mxu0
        %1509 = vxpose.xlu0.b32.start [1/16] %v1183, 128
        %1510 = vxpose.xlu0.b32.cont [2/16] %v1184, 128
        %1511 = vxpose.xlu0.b32.cont [3/16] 0.0, 128
        %1512 = vxpose.xlu0.b32.cont [4/16] 0.0, 128
        %1513 = vxpose.xlu0.b32.cont [5/16] 0.0, 128
        %1514 = vxpose.xlu0.b32.cont [6/16] 0.0, 128
        %1515 = vxpose.xlu0.b32.cont [7/16] 0.0, 128
        %1516 = vxpose.xlu0.b32.cont [8/16] 0.0, 128
        %1517 = vxpose.xlu0.b32.cont [9/16] 0.0, 128
        %1518 = vxpose.xlu0.b32.cont [10/16] 0.0, 128
        %1519 = vxpose.xlu0.b32.cont [11/16] 0.0, 128
        %1520 = vxpose.xlu0.b32.cont [12/16] 0.0, 128
        %1521 = vxpose.xlu0.b32.cont [13/16] 0.0, 128
        %1522 = vxpose.xlu0.b32.cont [14/16] 0.0, 128
        %1523 = vxpose.xlu0.b32.cont [15/16] 0.0, 128
        %1524 = vxpose.xlu0.b32.end [16/16] 0.0, 128
        %v1525 = vpop.trf.xlu0
        %v1526 = vpop.trf.xlu0
        %v1527 = vpop.trf.xlu0
        %v1528 = vpop.trf.xlu0
        %v1529 = vpop.trf.xlu0
        %v1530 = vpop.trf.xlu0
        %v1531 = vpop.trf.xlu0
        %v1532 = vpop.trf.xlu0
        %v1533 = vpop.trf.xlu0
        %v1534 = vpop.trf.xlu0
        %v1535 = vpop.trf.xlu0
        %v1536 = vpop.trf.xlu0
        %v1537 = vpop.trf.xlu0
        %v1538 = vpop.trf.xlu0
        %v1539 = vpop.trf.xlu0
        %v1540 = vpop.trf.xlu0
        %v1542 = vsel %vm1225, %v1525, 0
        %1544 = vmatprep.subr.mxu0 0.0
        %1545 = vmatpush1.msra.mxu0 0.0
        %1546 = vmatprep.subr.mxu0 0.0
        %1547 = vmatpush1.msra.mxu0 0.0
        %1548 = vmatprep.subr.mxu0 0.0
        %1549 = vmatpush1.msra.mxu0 0.0
        %1550 = vmatprep.subr.mxu0 0.0
        %1551 = vmatpush1.msra.mxu0 0.0
        %1552 = vmatprep.subr.mxu0 0.0
        %1553 = vmatpush1.msra.mxu0 0.0
        %1554 = vmatprep.subr.mxu0 0.0
        %1555 = vmatpush1.msra.mxu0 0.0
        %1556 = vmatprep.subr.mxu0 0.0
        %1557 = vmatpush1.msra.mxu0 0.0
        %1558 = vmatprep.subr.mxu0 0.0
        %1559 = vmatpush1.msra.mxu0 0.0
        %1560 = vmatprep.subr.mxu0 0.0
        %1561 = vmatpush1.msra.mxu0 0.0
        %1562 = vmatprep.subr.mxu0 0.0
        %1563 = vmatpush1.msra.mxu0 0.0
        %1564 = vmatprep.subr.mxu0 0.0
        %1565 = vmatpush1.msra.mxu0 0.0
        %1566 = vmatprep.subr.mxu0 0.0
        %1567 = vmatpush1.msra.mxu0 0.0
        %1568 = vmatprep.subr.mxu0 0.0
        %1569 = vmatpush1.msra.mxu0 0.0
        %1570 = vmatprep.subr.mxu0 0.0
        %1571 = vmatpush1.msra.mxu0 0.0
        %1572 = vmatprep.subr.mxu0 0.0
        %1573 = vmatpush1.msra.mxu0 %v385
        %1574 = vmatprep.subr.mxu0 0.0
        %1575 = vmatpush1.msra.mxu0 %v384
        %1576 = vmatprep.subr.mxu0 0.0
        %1577 = vmatpush2.msra.mxu0 0.0
        %1578 = vmatprep.subr.mxu0 0.0
        %1579 = vmatpush2.msra.mxu0 0.0
        %1580 = vmatprep.subr.mxu0 0.0
        %1581 = vmatpush2.msra.mxu0 0.0
        %1582 = vmatprep.subr.mxu0 0.0
        %1583 = vmatpush2.msra.mxu0 0.0
        %1584 = vmatprep.subr.mxu0 0.0
        %1585 = vmatpush2.msra.mxu0 0.0
        %1586 = vmatprep.subr.mxu0 0.0
        %1587 = vmatpush2.msra.mxu0 0.0
        %1588 = vmatprep.subr.mxu0 0.0
        %1589 = vmatpush2.msra.mxu0 0.0
        %1590 = vmatprep.subr.mxu0 0.0
        %1591 = vmatpush2.msra.mxu0 0.0
        %1592 = vmatprep.subr.mxu0 0.0
        %1593 = vmatpush2.msra.mxu0 0.0
        %1594 = vmatprep.subr.mxu0 0.0
        %1595 = vmatpush2.msra.mxu0 0.0
        %1596 = vmatprep.subr.mxu0 0.0
        %1597 = vmatpush2.msra.mxu0 0.0
        %1598 = vmatprep.subr.mxu0 0.0
        %1599 = vmatpush2.msra.mxu0 0.0
        %1600 = vmatprep.subr.mxu0 0.0
        %1601 = vmatpush2.msra.mxu0 0.0
        %1602 = vmatprep.subr.mxu0 0.0
        %1603 = vmatpush2.msra.mxu0 0.0
        %1604 = vmatprep.subr.mxu0 0.0
        %1605 = vmatpush2.msra.mxu0 0.0
        %1606 = vmatprep.subr.mxu0 0.0
        %1607 = vmatpush2.msra.mxu0 0.0
        %1608 = vmatprep.mubr.f32.mxu0 0.0
        %1609 = vmatmul.mubr.f32.gmra.mxu0 %v1542
        %v1610 = vpop.f32.mrf.mxu0
        %v1611 = vadd.f32 0.0, %v1610
        %v1612 = vpop.f32.mrf.mxu0
        %1613 = vdwg.mxu0
        %v1614 = vld [vmem:[%s7] sm:$0xff]
        %v1615 = vld [vmem:[%s7 + $0x8] sm:$0xff]
        %v1616 = vld [vmem:[%s7 + $0x10] sm:$0xff]
        %v1617 = vld [vmem:[%s7 + $0x18] sm:$0xff]
        %v1619 = vsel %vm406, %v1296, 0
        %v1622 = vsel %vm406, %v1401, 0
        %v1625 = vsel %vm406, %v1506, 0
        %v1628 = vsel %vm406, %v1611, 0
        %1630 = vmatprep.subr.mxu0 0.0
        %1631 = vmatpush1.msra.mxu0 0.0
        %1632 = vmatprep.subr.mxu0 0.0
        %1633 = vmatpush1.msra.mxu0 0.0
        %1634 = vmatprep.subr.mxu0 0.0
        %1635 = vmatpush1.msra.mxu0 0.0
        %1636 = vmatprep.subr.mxu0 0.0
        %1637 = vmatpush1.msra.mxu0 0.0
        %1638 = vmatprep.subr.mxu0 0.0
        %1639 = vmatpush1.msra.mxu0 0.0
        %1640 = vmatprep.subr.mxu0 0.0
        %1641 = vmatpush1.msra.mxu0 0.0
        %1642 = vmatprep.subr.mxu0 0.0
        %1643 = vmatpush1.msra.mxu0 0.0
        %1644 = vmatprep.subr.mxu0 0.0
        %1645 = vmatpush1.msra.mxu0 0.0
        %1646 = vmatprep.subr.mxu0 0.0
        %1647 = vmatpush1.msra.mxu0 0.0
        %1648 = vmatprep.subr.mxu0 0.0
        %1649 = vmatpush1.msra.mxu0 0.0
        %1650 = vmatprep.subr.mxu0 0.0
        %1651 = vmatpush1.msra.mxu0 0.0
        %1652 = vmatprep.subr.mxu0 0.0
        %1653 = vmatpush1.msra.mxu0 0.0
        %1654 = vmatprep.subr.mxu0 0.0
        %1655 = vmatpush1.msra.mxu0 %v1617
        %1656 = vmatprep.subr.mxu0 0.0
        %1657 = vmatpush1.msra.mxu0 %v1616
        %1658 = vmatprep.subr.mxu0 0.0
        %1659 = vmatpush1.msra.mxu0 %v1615
        %1660 = vmatprep.subr.mxu0 0.0
        %1661 = vmatpush1.msra.mxu0 %v1614
        %1662 = vmatprep.subr.mxu0 0.0
        %1663 = vmatpush2.msra.mxu0 0.0
        %1664 = vmatprep.subr.mxu0 0.0
        %1665 = vmatpush2.msra.mxu0 0.0
        %1666 = vmatprep.subr.mxu0 0.0
        %1667 = vmatpush2.msra.mxu0 0.0
        %1668 = vmatprep.subr.mxu0 0.0
        %1669 = vmatpush2.msra.mxu0 0.0
        %1670 = vmatprep.subr.mxu0 0.0
        %1671 = vmatpush2.msra.mxu0 0.0
        %1672 = vmatprep.subr.mxu0 0.0
        %1673 = vmatpush2.msra.mxu0 0.0
        %1674 = vmatprep.subr.mxu0 0.0
        %1675 = vmatpush2.msra.mxu0 0.0
        %1676 = vmatprep.subr.mxu0 0.0
        %1677 = vmatpush2.msra.mxu0 0.0
        %1678 = vmatprep.subr.mxu0 0.0
        %1679 = vmatpush2.msra.mxu0 0.0
        %1680 = vmatprep.subr.mxu0 0.0
        %1681 = vmatpush2.msra.mxu0 0.0
        %1682 = vmatprep.subr.mxu0 0.0
        %1683 = vmatpush2.msra.mxu0 0.0
        %1684 = vmatprep.subr.mxu0 0.0
        %1685 = vmatpush2.msra.mxu0 0.0
        %1686 = vmatprep.subr.mxu0 0.0
        %1687 = vmatpush2.msra.mxu0 0.0
        %1688 = vmatprep.subr.mxu0 0.0
        %1689 = vmatpush2.msra.mxu0 0.0
        %1690 = vmatprep.subr.mxu0 0.0
        %1691 = vmatpush2.msra.mxu0 0.0
        %1692 = vmatprep.subr.mxu0 0.0
        %1693 = vmatpush2.msra.mxu0 0.0
        %1694 = vmatprep.mubr.f32.mxu0 0.0
        %1695 = vmatmul.mubr.f32.gmra.mxu0 %v1619
        %v1696 = vpop.f32.mrf.mxu0
        %v1697 = vadd.f32 0.0, %v1696
        %v1698 = vpop.f32.mrf.mxu0
        %1699 = vmatprep.mubr.f32.mxu0 0.0
        %1700 = vmatmul.mubr.f32.gmra.mxu0 %v1622
        %v1701 = vpop.f32.mrf.mxu0
        %v1702 = vadd.f32 0.0, %v1701
        %v1703 = vpop.f32.mrf.mxu0
        %1704 = vmatprep.mubr.f32.mxu0 0.0
        %1705 = vmatmul.mubr.f32.gmra.mxu0 %v1625
        %v1706 = vpop.f32.mrf.mxu0
        %v1707 = vadd.f32 0.0, %v1706
        %v1708 = vpop.f32.mrf.mxu0
        %1709 = vmatprep.mubr.f32.mxu0 0.0
        %1710 = vmatmul.mubr.f32.gmra.mxu0 %v1628
        %v1711 = vpop.f32.mrf.mxu0
        %v1712 = vadd.f32 0.0, %v1711
        %v1713 = vpop.f32.mrf.mxu0
        %1714 = vdwg.mxu0
        %1715 = vst.msk [vmem:[%s347] sm:$0xff] %vm1225, %v1697
        %1716 = vst.msk [vmem:[%s347 + $0x8] sm:$0xff] %vm1225, %v1702
        %1717 = vst.msk [vmem:[%s347 + $0x10] sm:$0xff] %vm1225, %v1707
        %1718 = vst.msk [vmem:[%s347 + $0x18] sm:$0xff] %vm1225, %v1712
        %s1719 = sand.u32 %s210, 1
        %s1720 = scalar_lea.sflag [#allocation3], %s1719
        %s1721 = sand.u32 %s210, 1
        %s1722 = smul.addr %s1721, 32
        %s1723 = scalar_lea.vmem [#allocation2], %s1722
        %s1724 = smul.u32 4, %s24
        %p1725 = scmp.lt.s32.totalorder %s1724, 7
        %s1726 = scalar_select %p1725, %s1724, 7
        %s1727 = smul.addr %s1726, 2
        %s1728 = smul.addr %s1727, 8
        %s1729 = scalar_lea.vmem %s9, %s1728
        // Predicated region
        $region53: #{tpu_custom_call.1} parent=51 // pred_check
          %p1730 = pneg %p220
        $region54: #{tpu_custom_call.1} parent=51 // pred_check_branch
          %1732 = sbr.rel (%p1730) target = $region56
        $region55: #{tpu_custom_call.1} parent=51 // pred_region
          %s1733 = smul.u32 4, %s24
          %s1735 = ssub.s32 512, 512
          %1736 = vsyncadd %s1720, %s1735
          %s1737 = smul.addr %s1733, 128
          %s1738 = scalar_lea.hbm %s8, %s1737
          %s1739 = sshll.u32 %s1723, 4
          %s1740 = int_to_ptr.vmem [resolvable:$true] %s1739
          %1745 = dma.vmem_to_hbm [thread:$0]  %s1740, 512, %s1738, %s1720, 128, 128, 8
        $region56: #{tpu_custom_call.1} parent=51 // pred_fallthru
          _
        // Predicated region
        $region57: #{tpu_custom_call.1} parent=51 // pred_check
          %p1746 = pneg %p246
        $region58: #{tpu_custom_call.1} parent=51 // pred_check_branch
          %1748 = sbr.rel (%p1746) target = $region60
        $region59: #{tpu_custom_call.1} parent=51 // pred_region
          %s1749 = smul.u32 4, %s24
        $region60: #{tpu_custom_call.1} parent=51 // pred_fallthru
          _
      $region52: #{tpu_custom_call.1} parent=5 // pred_fallthru
        _
      %p1750 = scmp.le.s32.totalorder 2, %s19
      // Predicated region
      $region61: #{tpu_custom_call.1} parent=5 // pred_check
        %p1751 = pneg %p1750
      $region62: #{tpu_custom_call.1} parent=5 // pred_check_branch
        %1753 = sbr.rel (%p1751) target = $region64
      $region63: #{tpu_custom_call.1} parent=5 // pred_region
        %s1754 = ssub.s32 %s19, 2
        // Predicated region
        $region65: #{tpu_custom_call.1} parent=63 // pred_check
          %p1755 = pneg %p226
        $region66: #{tpu_custom_call.1} parent=63 // pred_check_branch
          %1757 = sbr.rel (%p1755) target = $region68
        $region67: #{tpu_custom_call.1} parent=63 // pred_region
          %s1758 = sand.u32 %s211, 1
          %s1759 = scalar_lea.sflag [#allocation3], %s1758
          %s1760 = sand.u32 %s211, 1
          %s1761 = smul.addr %s1760, 32
          %s1762 = scalar_lea.vmem [#allocation2], %s1761
          %1763 = dma.done %s1759, 512
        $region68: #{tpu_custom_call.1} parent=63 // pred_fallthru
          _
        // Predicated region
        $region69: #{tpu_custom_call.1} parent=63 // pred_check
          %p1764 = pneg %p252
        $region70: #{tpu_custom_call.1} parent=63 // pred_check_branch
          %1766 = sbr.rel (%p1764) target = $region72
        $region71: #{tpu_custom_call.1} parent=63 // pred_region
          %s1767 = smul.u32 4, %s25
          %p1768 = scmp.lt.s32.totalorder %s1767, 7
          %s1769 = scalar_select %p1768, %s1767, 7
          %s1770 = smul.addr %s1769, 2
          %s1771 = smul.addr %s1770, 8
          %s1772 = scalar_lea.vmem %s9, %s1771
        $region72: #{tpu_custom_call.1} parent=63 // pred_fallthru
          _
      $region64: #{tpu_custom_call.1} parent=5 // pred_fallthru
        _
    $region6: #{tpu_custom_call.1} parent=1 // loop_footer
      %s23 = sadd.s32 1, %s19
    $region7: #{tpu_custom_call.1} parent=1 // loop_footer_branch
      %18 = sbr.rel target = $region3
    $region8: #{tpu_custom_call.1} parent=1 // loop_exit
      _
    %1773 = vsyncpa [#allocation3], 1
    %s1774 = scalar_lea.sflag [#allocation3], 1
    %1775 = vsyncpa %s1774, 1

</llo_original>
